<compile_context>
chip_gen: v6e
topology: v6e:2x2x1
jax: 0.10.0
libtpu: 0.0.40
codegen_flags: <defaults>
</compile_context>

<pallas_src>
import functools

import jax
import jax.numpy as jnp
from jax.experimental import pallas as pl
from jax.experimental.pallas import tpu as pltpu


def _mha_kernel(*refs, num_heads, dim_out, dim_in, seq_len, block_b,
                has_mask, compute_dtype):
    if has_mask:
        (q_ref, k_ref, v_ref, m_ref,
         wq_ref, bq_ref, wk_ref, wv_ref, bv_ref, wo_ref, bo_ref,
         out_ref) = refs
    else:
        (q_ref, k_ref, v_ref,
         wq_ref, bq_ref, wk_ref, wv_ref, bv_ref, wo_ref, bo_ref,
         out_ref) = refs
        m_ref = None

    f32 = jnp.float32
    cd = compute_dtype
    hd = num_heads * dim_out
    rows = block_b * seq_len

    # ---- Fused all-head projections: one wide MXU pass per input ----------
    # Blocks arrive pre-flattened to (rows, dim_in).  The attention scale is
    # already folded into wq/bq.  bk is intentionally absent: softmax is
    # shift-invariant along the key axis and K only feeds Q @ K^T, so the K
    # bias provably cancels.
    Q = jnp.dot(q_ref[...], wq_ref[...], preferred_element_type=f32) + bq_ref[...]
    K = jnp.dot(k_ref[...], wk_ref[...], preferred_element_type=f32)
    V = jnp.dot(v_ref[...], wv_ref[...], preferred_element_type=f32) + bv_ref[...]

    # Split the leading (sublane) dim back into (batch, seq); layout-trivial
    # when seq_len is a multiple of 8 (it is at the exercised shapes).
    Q = Q.reshape(block_b, seq_len, hd)
    K = K.reshape(block_b, seq_len, hd)
    V = V.reshape(block_b, seq_len, hd)

    if has_mask:
        # Hoisted out of the head loop: one int8 load + compare, reused by
        # every head (torch.masked_fill semantics: fill where mask is True).
        masked = m_ref[...] != 0                     # (block_b, seq, seq) bool

    Wo = wo_ref[...]                                 # (hd, dim_in), resident
    acc = jnp.zeros((rows, dim_in), f32)

    # Static unroll over heads.  Per-head output projections are accumulated
    # directly: no H-way lane concat, live set stays one head wide.
    for h in range(num_heads):
        lo = h * dim_out
        Qh = Q[:, :, lo:lo + dim_out].astype(cd)
        Kh = K[:, :, lo:lo + dim_out].astype(cd)
        Vh = V[:, :, lo:lo + dim_out].astype(cd)

        # Scores (already scaled): s[b, n, m] = Qh[b, n, :] . Kh[b, m, :]
        s = jnp.einsum("bnd,bmd->bnm", Qh, Kh, preferred_element_type=f32)
        if has_mask:
            s = jnp.where(masked, jnp.float32(-1.0e9), s)

        # Exact f32 softmax (max-subtracted).  NOTE: pl.reciprocal(approx=True)
        # is deliberately NOT used — its approximation error broke parity with
        # the exact-softmax reference in the previous revision.
        s = s - jnp.max(s, axis=-1, keepdims=True)
        p = jnp.exp(s)
        p = p / jnp.sum(p, axis=-1, keepdims=True)

        y = jnp.einsum("bnm,bmd->bnd", p.astype(cd), Vh,
                       preferred_element_type=f32)   # (block_b, seq, dim_out)
        y2 = y.reshape(rows, dim_out).astype(cd)
        acc = acc + jnp.dot(y2, Wo[lo:lo + dim_out, :],
                            preferred_element_type=f32)

    out_ref[...] = (acc + bo_ref[...]).astype(out_ref.dtype)


def _pick_block_b(batch, seq, target_rows=256):
    """Largest divisor of `batch` giving ~target_rows rows per grid step."""
    if seq % 8 != 0:
        return batch                    # single step: block == full array
    bt = max(1, min(batch, max(1, target_rows // seq)))
    while batch % bt:
        bt -= 1
    return bt


def multi_head_attention(query, key, value, params, mask=None, *,
                         compute_dtype=jnp.float32, block_b=None):
    """query/key/value: (B, N, dim_in) f32; mask: optional (B, N, N) bool."""
    wq, bq, wk, bk, wv, bv, wo, bo = params
    del bk  # provably cancels (softmax shift-invariance); see kernel comment
    B, N, dim_in = query.shape
    H, _, dim_out = wq.shape
    HD = H * dim_out
    scale = 1.0 / (dim_out ** 0.5)

    # ---- one-time wrapper-side layout / dtype work -------------------------
    # Per-head weights fused to (dim_in, H*dim_out) so every projection is a
    # single wide MXU matmul; the attention scale is folded into the Q
    # projection (weight-side constant, not an in-kernel pass).
    wq_f = (jnp.transpose(wq, (1, 0, 2)).reshape(dim_in, HD) * scale).astype(compute_dtype)
    wk_f = jnp.transpose(wk, (1, 0, 2)).reshape(dim_in, HD).astype(compute_dtype)
    wv_f = jnp.transpose(wv, (1, 0, 2)).reshape(dim_in, HD).astype(compute_dtype)
    bq_f = (bq.reshape(1, HD) * scale).astype(jnp.float32)
    bv_f = bv.reshape(1, HD).astype(jnp.float32)
    wo_f = wo.reshape(HD, dim_in).astype(compute_dtype)
    bo_f = bo.reshape(1, dim_in).astype(jnp.float32)

    # Inputs flattened to (B*N, dim_in): each grid step works on a
    # (block_b*N, dim_in) row slab (full 8-sublane rows, amortized per-step
    # overhead).  Output uses the same slab and is reshaped outside.
    q2 = query.reshape(B * N, dim_in).astype(compute_dtype)
    k2 = key.reshape(B * N, dim_in).astype(compute_dtype)
    v2 = value.reshape(B * N, dim_in).astype(compute_dtype)

    if block_b is None:
        block_b = _pick_block_b(B, N)
    assert B % block_b == 0, "block_b must divide the batch size"
    rows = block_b * N
    grid = (B // block_b,)
    has_mask = mask is not None

    def row_map(i):            # q/k/v/out row slabs
        return (i, 0)

    def mask_map(i):
        return (i, 0, 0)

    def const_map(i):          # weights/biases: DMA'd once, VMEM-resident
        return (0, 0)

    def const_spec(shape):
        # Single-buffered: constant blocks never change across the grid, so
        # don't reserve a second (double-buffering) VMEM copy for them.
        try:
            return pl.BlockSpec(shape, const_map, pipeline_mode=pl.Buffered(1))
        except (TypeError, AttributeError):   # older jax: graceful fallback
            return pl.BlockSpec(shape, const_map)

    in_specs = [
        pl.BlockSpec((rows, dim_in), row_map),     # query rows
        pl.BlockSpec((rows, dim_in), row_map),     # key rows
        pl.BlockSpec((rows, dim_in), row_map),     # value rows
    ]
    inputs = [q2, k2, v2]
    if has_mask:
        in_specs.append(pl.BlockSpec((block_b, N, N), mask_map))
        inputs.append(mask.astype(jnp.int8))       # 4x less HBM than f32
    in_specs += [
        const_spec((dim_in, HD)),                  # Wq (scale folded in)
        const_spec((1, HD)),                       # bq (scale folded in)
        const_spec((dim_in, HD)),                  # Wk (bk dropped)
        const_spec((dim_in, HD)),                  # Wv
        const_spec((1, HD)),                       # bv
        const_spec((HD, dim_in)),                  # Wo
        const_spec((1, dim_in)),                   # bo
    ]
    inputs += [wq_f, bq_f, wk_f, wv_f, bv_f, wo_f, bo_f]

    kernel = functools.partial(
        _mha_kernel, num_heads=H, dim_out=dim_out, dim_in=dim_in,
        seq_len=N, block_b=block_b, has_mask=has_mask,
        compute_dtype=compute_dtype)

    out = pl.pallas_call(
        kernel,
        out_shape=jax.ShapeDtypeStruct((B * N, dim_in), jnp.float32),
        grid_spec=pltpu.PrefetchScalarGridSpec(
            num_scalar_prefetch=0,
            grid=grid,
            in_specs=in_specs,
            out_specs=pl.BlockSpec((rows, dim_in), row_map),
        ),
        compiler_params=pltpu.CompilerParams(
            dimension_semantics=("parallel",),
            # Tiny working set here; re-derive for realistic block sizes
            # (v7x: 64 MiB physical VMEM vs 128 MiB on v5e/v6e).
            vmem_limit_bytes=32 * 1024 * 1024,
        ),
    )(*inputs)
    return out.reshape(B, N, dim_in)


def init_params(key, num_heads, dim_in, dim_out):
    """Weights match the PyTorch module's uniform init ranges.  The PyTorch
    module zero-inits biases; here they are drawn small and nonzero so the
    test actually exercises the bias wiring (forward semantics unchanged)."""
    c_qkv = (6.0 / (dim_in + dim_out)) ** 0.5
    c_o = (6.0 / (num_heads * dim_out + dim_in)) ** 0.5
    kq, kk, kv, ko, kb = jax.random.split(key, 5)
    wq = jax.random.uniform(kq, (num_heads, dim_in, dim_out), jnp.float32, -c_qkv, c_qkv)
    wk = jax.random.uniform(kk, (num_heads, dim_in, dim_out), jnp.float32, -c_qkv, c_qkv)
    wv = jax.random.uniform(kv, (num_heads, dim_in, dim_out), jnp.float32, -c_qkv, c_qkv)
    b1, b2, b3, b4 = jax.random.split(kb, 4)
    bq = jax.random.uniform(b1, (num_heads, 1, dim_out), jnp.float32, -0.1, 0.1)
    bk = jax.random.uniform(b2, (num_heads, 1, dim_out), jnp.float32, -0.1, 0.1)
    bv = jax.random.uniform(b3, (num_heads, 1, dim_out), jnp.float32, -0.1, 0.1)
    # torch Wo: (dim_in, H*dim_out), applied as y @ Wo^T.  Store per-head
    # transposed slices: (H, dim_out, dim_in).
    wo_full = jax.random.uniform(ko, (dim_in, num_heads * dim_out), jnp.float32, -c_o, c_o)
    wo = jnp.transpose(wo_full.reshape(dim_in, num_heads, dim_out), (1, 2, 0))
    bo = jax.random.uniform(b4, (1, 1, dim_in), jnp.float32, -0.1, 0.1)
    return (wq, bq, wk, bk, wv, bv, wo, bo)


def _reference(query, key, value, params, mask=None):
    """Pure-JAX reference mirroring the PyTorch forward (keeps bk)."""
    wq, bq, wk, bk, wv, bv, wo, bo = params
    H = wq.shape[0]
    out = jnp.zeros(query.shape, jnp.float32) + bo[0]
    for h in range(H):
        Q = query @ wq[h] + bq[h]
        K = key @ wk[h] + bk[h]
        V = value @ wv[h] + bv[h]
        s = jnp.einsum("bnd,bmd->bnm", Q, K) / (Q.shape[-1] ** 0.5)
        if mask is not None:
            s = jnp.where(mask, -1.0e9, s)
        p = jax.nn.softmax(s, axis=-1)
        out = out + jnp.einsum("bnm,bmd->bnd", p, V) @ wo[h]
    return out


if __name__ == "__main__":
    B, N, DIM_IN, DIM_OUT, NUM_HEADS = 2, 8, 32, 16, 4

    key = jax.random.PRNGKey(0)
    kp, kq, kk, kv = jax.random.split(key, 4)
    params = init_params(kp, NUM_HEADS, DIM_IN, DIM_OUT)

    query = jax.random.normal(kq, (B, N, DIM_IN), jnp.float32)
    key_in = jax.random.normal(kk, (B, N, DIM_IN), jnp.float32)
    value = jax.random.normal(kv, (B, N, DIM_IN), jnp.float32)

    # f32 compute, no mask — strict parity with the PyTorch-style reference.
    out = jax.block_until_ready(multi_head_attention(query, key_in, value, params))
    ref = _reference(query, key_in, value, params)
    assert out.shape == (B, N, DIM_IN)
    assert jnp.allclose(out, ref, atol=2e-3, rtol=2e-3), "mismatch (no mask)"

    # f32 compute, causal mask (bool mask -> int8 inside the wrapper).
    mask = jnp.broadcast_to(jnp.triu(jnp.ones((N, N), dtype=jnp.bool_), k=1),
                            (B, N, N))
    out_m = jax.block_until_ready(
        multi_head_attention(query, key_in, value, params, mask=mask))
    ref_m = _reference(query, key_in, value, params, mask=mask)
    assert jnp.allclose(out_m, ref_m, atol=2e-3, rtol=2e-3), "mismatch (masked)"

    # bf16 matmul path (MXU-friendly on v6e/v7x); softmax stats stay f32.
    # Compared against the f32 reference with a widened tolerance.
    out_bf = jax.block_until_ready(
        multi_head_attention(query, key_in, value, params, mask=mask,
                             compute_dtype=jnp.bfloat16))
    assert jnp.allclose(out_bf, ref_m, atol=1e-1, rtol=1e-1), "mismatch (bf16)"

    print("KERNEL_OK")
</pallas_src>

<mosaic_0001>
module attributes {stable_mosaic.version = 11 : i64} {
  func.func @_mha_kernel(%arg0: i32, %arg1: memref<16x32xf32, #tpu.memory_space<vmem>>, %arg2: memref<16x32xf32, #tpu.memory_space<vmem>>, %arg3: memref<16x32xf32, #tpu.memory_space<vmem>>, %arg4: memref<32x64xf32, #tpu.memory_space<vmem>>, %arg5: memref<1x64xf32, #tpu.memory_space<vmem>>, %arg6: memref<32x64xf32, #tpu.memory_space<vmem>>, %arg7: memref<32x64xf32, #tpu.memory_space<vmem>>, %arg8: memref<1x64xf32, #tpu.memory_space<vmem>>, %arg9: memref<64x32xf32, #tpu.memory_space<vmem>>, %arg10: memref<1x32xf32, #tpu.memory_space<vmem>>, %arg11: memref<16x32xf32, #tpu.memory_space<vmem>>) attributes {dimension_semantics = [#tpu.dimension_semantics<parallel>], iteration_bounds = array<i64: 1>, scalar_prefetch = 0 : i64, scratch_operands = 0 : i64, tpu.core_type = #tpu.core_type<tc>, window_params = [{transform_indices = @transform_0, window_bounds = array<i64: 16, 32>}, {transform_indices = @transform_1, window_bounds = array<i64: 16, 32>}, {transform_indices = @transform_2, window_bounds = array<i64: 16, 32>}, {pipeline_mode = #tpu.pipeline_mode<synchronous>, transform_indices = @transform_3, window_bounds = array<i64: 32, 64>}, {pipeline_mode = #tpu.pipeline_mode<synchronous>, transform_indices = @transform_4, window_bounds = array<i64: 1, 64>}, {pipeline_mode = #tpu.pipeline_mode<synchronous>, transform_indices = @transform_5, window_bounds = array<i64: 32, 64>}, {pipeline_mode = #tpu.pipeline_mode<synchronous>, transform_indices = @transform_6, window_bounds = array<i64: 32, 64>}, {pipeline_mode = #tpu.pipeline_mode<synchronous>, transform_indices = @transform_7, window_bounds = array<i64: 1, 64>}, {pipeline_mode = #tpu.pipeline_mode<synchronous>, transform_indices = @transform_8, window_bounds = array<i64: 64, 32>}, {pipeline_mode = #tpu.pipeline_mode<synchronous>, transform_indices = @transform_9, window_bounds = array<i64: 1, 32>}, {transform_indices = @transform_10, window_bounds = array<i64: 16, 32>}]} {
    %c0 = arith.constant 0 : index
    %c0_0 = arith.constant 0 : index
    %0 = vector.load %arg1[%c0, %c0_0] : memref<16x32xf32, #tpu.memory_space<vmem>>, vector<16x32xf32>
    %c0_1 = arith.constant 0 : index
    %c0_2 = arith.constant 0 : index
    %1 = vector.load %arg4[%c0_1, %c0_2] : memref<32x64xf32, #tpu.memory_space<vmem>>, vector<32x64xf32>
    %cst = arith.constant dense<0.000000e+00> : vector<16x64xf32>
    %2 = tpu.matmul %0, %1, %cst {dimension_numbers = #tpu.dot_dimension_numbers<[1], [0], [0], [1], [0, 0, 1, 1], [], []>} : vector<16x32xf32>, vector<32x64xf32>, vector<16x64xf32> -> vector<16x64xf32>
    %c0_3 = arith.constant 0 : index
    %c0_4 = arith.constant 0 : index
    %3 = vector.load %arg5[%c0_3, %c0_4] : memref<1x64xf32, #tpu.memory_space<vmem>>, vector<1x64xf32>
    %4 = vector.broadcast %3 : vector<1x64xf32> to vector<16x64xf32>
    %5 = arith.addf %2, %4 : vector<16x64xf32>
    %c0_5 = arith.constant 0 : index
    %c0_6 = arith.constant 0 : index
    %6 = vector.load %arg2[%c0_5, %c0_6] : memref<16x32xf32, #tpu.memory_space<vmem>>, vector<16x32xf32>
    %c0_7 = arith.constant 0 : index
    %c0_8 = arith.constant 0 : index
    %7 = vector.load %arg6[%c0_7, %c0_8] : memref<32x64xf32, #tpu.memory_space<vmem>>, vector<32x64xf32>
    %cst_9 = arith.constant dense<0.000000e+00> : vector<16x64xf32>
    %8 = tpu.matmul %6, %7, %cst_9 {dimension_numbers = #tpu.dot_dimension_numbers<[1], [0], [0], [1], [0, 0, 1, 1], [], []>} : vector<16x32xf32>, vector<32x64xf32>, vector<16x64xf32> -> vector<16x64xf32>
    %c0_10 = arith.constant 0 : index
    %c0_11 = arith.constant 0 : index
    %9 = vector.load %arg3[%c0_10, %c0_11] : memref<16x32xf32, #tpu.memory_space<vmem>>, vector<16x32xf32>
    %c0_12 = arith.constant 0 : index
    %c0_13 = arith.constant 0 : index
    %10 = vector.load %arg7[%c0_12, %c0_13] : memref<32x64xf32, #tpu.memory_space<vmem>>, vector<32x64xf32>
    %cst_14 = arith.constant dense<0.000000e+00> : vector<16x64xf32>
    %11 = tpu.matmul %9, %10, %cst_14 {dimension_numbers = #tpu.dot_dimension_numbers<[1], [0], [0], [1], [0, 0, 1, 1], [], []>} : vector<16x32xf32>, vector<32x64xf32>, vector<16x64xf32> -> vector<16x64xf32>
    %c0_15 = arith.constant 0 : index
    %c0_16 = arith.constant 0 : index
    %12 = vector.load %arg8[%c0_15, %c0_16] : memref<1x64xf32, #tpu.memory_space<vmem>>, vector<1x64xf32>
    %13 = vector.broadcast %12 : vector<1x64xf32> to vector<16x64xf32>
    %14 = arith.addf %11, %13 : vector<16x64xf32>
    %15 = vector.shape_cast %5 : vector<16x64xf32> to vector<2x8x64xf32>
    %16 = vector.shape_cast %8 : vector<16x64xf32> to vector<2x8x64xf32>
    %17 = vector.shape_cast %14 : vector<16x64xf32> to vector<2x8x64xf32>
    %c0_17 = arith.constant 0 : index
    %c0_18 = arith.constant 0 : index
    %18 = vector.load %arg9[%c0_17, %c0_18] : memref<64x32xf32, #tpu.memory_space<vmem>>, vector<64x32xf32>
    %cst_19 = arith.constant 0.000000e+00 : f32
    %19 = vector.broadcast %cst_19 : f32 to vector<16x32xf32>
    %20 = vector.extract_strided_slice %15 {offsets = [0, 0, 0], sizes = [2, 8, 16], strides = [1, 1, 1]} : vector<2x8x64xf32> to vector<2x8x16xf32>
    %21 = vector.extract_strided_slice %16 {offsets = [0, 0, 0], sizes = [2, 8, 16], strides = [1, 1, 1]} : vector<2x8x64xf32> to vector<2x8x16xf32>
    %22 = vector.extract_strided_slice %17 {offsets = [0, 0, 0], sizes = [2, 8, 16], strides = [1, 1, 1]} : vector<2x8x64xf32> to vector<2x8x16xf32>
    "tpu.trace_start"() <{level = 10 : i32, message = "bnd,bmd->bnm"}> : () -> ()
    %cst_20 = arith.constant dense<0.000000e+00> : vector<2x8x8xf32>
    %23 = tpu.matmul %20, %21, %cst_20 {dimension_numbers = #tpu.dot_dimension_numbers<[2], [2], [1], [1], [0, 0, 0, 1, 1, 1], [0], [0]>} : vector<2x8x16xf32>, vector<2x8x16xf32>, vector<2x8x8xf32> -> vector<2x8x8xf32>
    "tpu.trace_stop"() : () -> ()
    %cst_21 = arith.constant dense<0xFF800000> : vector<2x8xf32>
    %24 = vector.multi_reduction <maximumf>, %23, %cst_21 [2] : vector<2x8x8xf32> to vector<2x8xf32>
    %25 = vector.shape_cast %24 : vector<2x8xf32> to vector<2x8x1xf32>
    %26 = vector.broadcast %25 : vector<2x8x1xf32> to vector<2x8x8xf32>
    %27 = arith.subf %23, %26 : vector<2x8x8xf32>
    %28 = math.exp %27 : vector<2x8x8xf32>
    %cst_22 = arith.constant dense<0.000000e+00> : vector<2x8xf32>
    %29 = vector.multi_reduction <add>, %28, %cst_22 [2] : vector<2x8x8xf32> to vector<2x8xf32>
    %30 = vector.shape_cast %29 : vector<2x8xf32> to vector<2x8x1xf32>
    %31 = vector.broadcast %30 : vector<2x8x1xf32> to vector<2x8x8xf32>
    %32 = arith.divf %28, %31 : vector<2x8x8xf32>
    "tpu.trace_start"() <{level = 10 : i32, message = "bnm,bmd->bnd"}> : () -> ()
    %cst_23 = arith.constant dense<0.000000e+00> : vector<2x8x16xf32>
    %33 = tpu.matmul %32, %22, %cst_23 {dimension_numbers = #tpu.dot_dimension_numbers<[2], [1], [1], [2], [0, 0, 0, 1, 1, 2], [0], [0]>} : vector<2x8x8xf32>, vector<2x8x16xf32>, vector<2x8x16xf32> -> vector<2x8x16xf32>
    "tpu.trace_stop"() : () -> ()
    %34 = vector.shape_cast %33 : vector<2x8x16xf32> to vector<16x16xf32>
    %35 = vector.extract_strided_slice %18 {offsets = [0, 0], sizes = [16, 32], strides = [1, 1]} : vector<64x32xf32> to vector<16x32xf32>
    %cst_24 = arith.constant dense<0.000000e+00> : vector<16x32xf32>
    %36 = tpu.matmul %34, %35, %cst_24 {dimension_numbers = #tpu.dot_dimension_numbers<[1], [0], [0], [1], [0, 0, 1, 1], [], []>} : vector<16x16xf32>, vector<16x32xf32>, vector<16x32xf32> -> vector<16x32xf32>
    %37 = arith.addf %19, %36 : vector<16x32xf32>
    %38 = vector.extract_strided_slice %15 {offsets = [0, 0, 16], sizes = [2, 8, 16], strides = [1, 1, 1]} : vector<2x8x64xf32> to vector<2x8x16xf32>
    %39 = vector.extract_strided_slice %16 {offsets = [0, 0, 16], sizes = [2, 8, 16], strides = [1, 1, 1]} : vector<2x8x64xf32> to vector<2x8x16xf32>
    %40 = vector.extract_strided_slice %17 {offsets = [0, 0, 16], sizes = [2, 8, 16], strides = [1, 1, 1]} : vector<2x8x64xf32> to vector<2x8x16xf32>
    "tpu.trace_start"() <{level = 10 : i32, message = "bnd,bmd->bnm"}> : () -> ()
    %cst_25 = arith.constant dense<0.000000e+00> : vector<2x8x8xf32>
    %41 = tpu.matmul %38, %39, %cst_25 {dimension_numbers = #tpu.dot_dimension_numbers<[2], [2], [1], [1], [0, 0, 0, 1, 1, 1], [0], [0]>} : vector<2x8x16xf32>, vector<2x8x16xf32>, vector<2x8x8xf32> -> vector<2x8x8xf32>
    "tpu.trace_stop"() : () -> ()
    %cst_26 = arith.constant dense<0xFF800000> : vector<2x8xf32>
    %42 = vector.multi_reduction <maximumf>, %41, %cst_26 [2] : vector<2x8x8xf32> to vector<2x8xf32>
    %43 = vector.shape_cast %42 : vector<2x8xf32> to vector<2x8x1xf32>
    %44 = vector.broadcast %43 : vector<2x8x1xf32> to vector<2x8x8xf32>
    %45 = arith.subf %41, %44 : vector<2x8x8xf32>
    %46 = math.exp %45 : vector<2x8x8xf32>
    %cst_27 = arith.constant dense<0.000000e+00> : vector<2x8xf32>
    %47 = vector.multi_reduction <add>, %46, %cst_27 [2] : vector<2x8x8xf32> to vector<2x8xf32>
    %48 = vector.shape_cast %47 : vector<2x8xf32> to vector<2x8x1xf32>
    %49 = vector.broadcast %48 : vector<2x8x1xf32> to vector<2x8x8xf32>
    %50 = arith.divf %46, %49 : vector<2x8x8xf32>
    "tpu.trace_start"() <{level = 10 : i32, message = "bnm,bmd->bnd"}> : () -> ()
    %cst_28 = arith.constant dense<0.000000e+00> : vector<2x8x16xf32>
    %51 = tpu.matmul %50, %40, %cst_28 {dimension_numbers = #tpu.dot_dimension_numbers<[2], [1], [1], [2], [0, 0, 0, 1, 1, 2], [0], [0]>} : vector<2x8x8xf32>, vector<2x8x16xf32>, vector<2x8x16xf32> -> vector<2x8x16xf32>
    "tpu.trace_stop"() : () -> ()
    %52 = vector.shape_cast %51 : vector<2x8x16xf32> to vector<16x16xf32>
    %53 = vector.extract_strided_slice %18 {offsets = [16, 0], sizes = [16, 32], strides = [1, 1]} : vector<64x32xf32> to vector<16x32xf32>
    %cst_29 = arith.constant dense<0.000000e+00> : vector<16x32xf32>
    %54 = tpu.matmul %52, %53, %cst_29 {dimension_numbers = #tpu.dot_dimension_numbers<[1], [0], [0], [1], [0, 0, 1, 1], [], []>} : vector<16x16xf32>, vector<16x32xf32>, vector<16x32xf32> -> vector<16x32xf32>
    %55 = arith.addf %37, %54 : vector<16x32xf32>
    %56 = vector.extract_strided_slice %15 {offsets = [0, 0, 32], sizes = [2, 8, 16], strides = [1, 1, 1]} : vector<2x8x64xf32> to vector<2x8x16xf32>
    %57 = vector.extract_strided_slice %16 {offsets = [0, 0, 32], sizes = [2, 8, 16], strides = [1, 1, 1]} : vector<2x8x64xf32> to vector<2x8x16xf32>
    %58 = vector.extract_strided_slice %17 {offsets = [0, 0, 32], sizes = [2, 8, 16], strides = [1, 1, 1]} : vector<2x8x64xf32> to vector<2x8x16xf32>
    "tpu.trace_start"() <{level = 10 : i32, message = "bnd,bmd->bnm"}> : () -> ()
    %cst_30 = arith.constant dense<0.000000e+00> : vector<2x8x8xf32>
    %59 = tpu.matmul %56, %57, %cst_30 {dimension_numbers = #tpu.dot_dimension_numbers<[2], [2], [1], [1], [0, 0, 0, 1, 1, 1], [0], [0]>} : vector<2x8x16xf32>, vector<2x8x16xf32>, vector<2x8x8xf32> -> vector<2x8x8xf32>
    "tpu.trace_stop"() : () -> ()
    %cst_31 = arith.constant dense<0xFF800000> : vector<2x8xf32>
    %60 = vector.multi_reduction <maximumf>, %59, %cst_31 [2] : vector<2x8x8xf32> to vector<2x8xf32>
    %61 = vector.shape_cast %60 : vector<2x8xf32> to vector<2x8x1xf32>
    %62 = vector.broadcast %61 : vector<2x8x1xf32> to vector<2x8x8xf32>
    %63 = arith.subf %59, %62 : vector<2x8x8xf32>
    %64 = math.exp %63 : vector<2x8x8xf32>
    %cst_32 = arith.constant dense<0.000000e+00> : vector<2x8xf32>
    %65 = vector.multi_reduction <add>, %64, %cst_32 [2] : vector<2x8x8xf32> to vector<2x8xf32>
    %66 = vector.shape_cast %65 : vector<2x8xf32> to vector<2x8x1xf32>
    %67 = vector.broadcast %66 : vector<2x8x1xf32> to vector<2x8x8xf32>
    %68 = arith.divf %64, %67 : vector<2x8x8xf32>
    "tpu.trace_start"() <{level = 10 : i32, message = "bnm,bmd->bnd"}> : () -> ()
    %cst_33 = arith.constant dense<0.000000e+00> : vector<2x8x16xf32>
    %69 = tpu.matmul %68, %58, %cst_33 {dimension_numbers = #tpu.dot_dimension_numbers<[2], [1], [1], [2], [0, 0, 0, 1, 1, 2], [0], [0]>} : vector<2x8x8xf32>, vector<2x8x16xf32>, vector<2x8x16xf32> -> vector<2x8x16xf32>
    "tpu.trace_stop"() : () -> ()
    %70 = vector.shape_cast %69 : vector<2x8x16xf32> to vector<16x16xf32>
    %71 = vector.extract_strided_slice %18 {offsets = [32, 0], sizes = [16, 32], strides = [1, 1]} : vector<64x32xf32> to vector<16x32xf32>
    %cst_34 = arith.constant dense<0.000000e+00> : vector<16x32xf32>
    %72 = tpu.matmul %70, %71, %cst_34 {dimension_numbers = #tpu.dot_dimension_numbers<[1], [0], [0], [1], [0, 0, 1, 1], [], []>} : vector<16x16xf32>, vector<16x32xf32>, vector<16x32xf32> -> vector<16x32xf32>
    %73 = arith.addf %55, %72 : vector<16x32xf32>
    %74 = vector.extract_strided_slice %15 {offsets = [0, 0, 48], sizes = [2, 8, 16], strides = [1, 1, 1]} : vector<2x8x64xf32> to vector<2x8x16xf32>
    %75 = vector.extract_strided_slice %16 {offsets = [0, 0, 48], sizes = [2, 8, 16], strides = [1, 1, 1]} : vector<2x8x64xf32> to vector<2x8x16xf32>
    %76 = vector.extract_strided_slice %17 {offsets = [0, 0, 48], sizes = [2, 8, 16], strides = [1, 1, 1]} : vector<2x8x64xf32> to vector<2x8x16xf32>
    "tpu.trace_start"() <{level = 10 : i32, message = "bnd,bmd->bnm"}> : () -> ()
    %cst_35 = arith.constant dense<0.000000e+00> : vector<2x8x8xf32>
    %77 = tpu.matmul %74, %75, %cst_35 {dimension_numbers = #tpu.dot_dimension_numbers<[2], [2], [1], [1], [0, 0, 0, 1, 1, 1], [0], [0]>} : vector<2x8x16xf32>, vector<2x8x16xf32>, vector<2x8x8xf32> -> vector<2x8x8xf32>
    "tpu.trace_stop"() : () -> ()
    %cst_36 = arith.constant dense<0xFF800000> : vector<2x8xf32>
    %78 = vector.multi_reduction <maximumf>, %77, %cst_36 [2] : vector<2x8x8xf32> to vector<2x8xf32>
    %79 = vector.shape_cast %78 : vector<2x8xf32> to vector<2x8x1xf32>
    %80 = vector.broadcast %79 : vector<2x8x1xf32> to vector<2x8x8xf32>
    %81 = arith.subf %77, %80 : vector<2x8x8xf32>
    %82 = math.exp %81 : vector<2x8x8xf32>
    %cst_37 = arith.constant dense<0.000000e+00> : vector<2x8xf32>
    %83 = vector.multi_reduction <add>, %82, %cst_37 [2] : vector<2x8x8xf32> to vector<2x8xf32>
    %84 = vector.shape_cast %83 : vector<2x8xf32> to vector<2x8x1xf32>
    %85 = vector.broadcast %84 : vector<2x8x1xf32> to vector<2x8x8xf32>
    %86 = arith.divf %82, %85 : vector<2x8x8xf32>
    "tpu.trace_start"() <{level = 10 : i32, message = "bnm,bmd->bnd"}> : () -> ()
    %cst_38 = arith.constant dense<0.000000e+00> : vector<2x8x16xf32>
    %87 = tpu.matmul %86, %76, %cst_38 {dimension_numbers = #tpu.dot_dimension_numbers<[2], [1], [1], [2], [0, 0, 0, 1, 1, 2], [0], [0]>} : vector<2x8x8xf32>, vector<2x8x16xf32>, vector<2x8x16xf32> -> vector<2x8x16xf32>
    "tpu.trace_stop"() : () -> ()
    %88 = vector.shape_cast %87 : vector<2x8x16xf32> to vector<16x16xf32>
    %89 = vector.extract_strided_slice %18 {offsets = [48, 0], sizes = [16, 32], strides = [1, 1]} : vector<64x32xf32> to vector<16x32xf32>
    %cst_39 = arith.constant dense<0.000000e+00> : vector<16x32xf32>
    %90 = tpu.matmul %88, %89, %cst_39 {dimension_numbers = #tpu.dot_dimension_numbers<[1], [0], [0], [1], [0, 0, 1, 1], [], []>} : vector<16x16xf32>, vector<16x32xf32>, vector<16x32xf32> -> vector<16x32xf32>
    %91 = arith.addf %73, %90 : vector<16x32xf32>
    %c0_40 = arith.constant 0 : index
    %c0_41 = arith.constant 0 : index
    %92 = vector.load %arg10[%c0_40, %c0_41] : memref<1x32xf32, #tpu.memory_space<vmem>>, vector<1x32xf32>
    %93 = vector.broadcast %92 : vector<1x32xf32> to vector<16x32xf32>
    %94 = arith.addf %91, %93 : vector<16x32xf32>
    %c0_42 = arith.constant 0 : index
    %c0_43 = arith.constant 0 : index
    %95 = vector.load %arg11[%c0_42, %c0_43] : memref<16x32xf32, #tpu.memory_space<vmem>>, vector<16x32xf32>
    tpu.vector_store %arg11[%c0_42, %c0_43], %94 {strides = array<i32>} : memref<16x32xf32, #tpu.memory_space<vmem>>, vector<16x32xf32>,
    return
  }
  func.func @transform_0(%arg0: i32) -> (i32, i32) {
    %c0_i32 = arith.constant 0 : i32
    %c0_i32_0 = arith.constant 0 : i32
    return %arg0, %c0_i32 : i32, i32
  }
  func.func @transform_1(%arg0: i32) -> (i32, i32) {
    %c0_i32 = arith.constant 0 : i32
    %c0_i32_0 = arith.constant 0 : i32
    return %arg0, %c0_i32 : i32, i32
  }
  func.func @transform_2(%arg0: i32) -> (i32, i32) {
    %c0_i32 = arith.constant 0 : i32
    %c0_i32_0 = arith.constant 0 : i32
    return %arg0, %c0_i32 : i32, i32
  }
  func.func @transform_3(%arg0: i32) -> (i32, i32) {
    %c0_i32 = arith.constant 0 : i32
    %c0_i32_0 = arith.constant 0 : i32
    %c0_i32_1 = arith.constant 0 : i32
    return %c0_i32, %c0_i32_0 : i32, i32
  }
  func.func @transform_4(%arg0: i32) -> (i32, i32) {
    %c0_i32 = arith.constant 0 : i32
    %c0_i32_0 = arith.constant 0 : i32
    %c0_i32_1 = arith.constant 0 : i32
    return %c0_i32, %c0_i32_0 : i32, i32
  }
  func.func @transform_5(%arg0: i32) -> (i32, i32) {
    %c0_i32 = arith.constant 0 : i32
    %c0_i32_0 = arith.constant 0 : i32
    %c0_i32_1 = arith.constant 0 : i32
    return %c0_i32, %c0_i32_0 : i32, i32
  }
  func.func @transform_6(%arg0: i32) -> (i32, i32) {
    %c0_i32 = arith.constant 0 : i32
    %c0_i32_0 = arith.constant 0 : i32
    %c0_i32_1 = arith.constant 0 : i32
    return %c0_i32, %c0_i32_0 : i32, i32
  }
  func.func @transform_7(%arg0: i32) -> (i32, i32) {
    %c0_i32 = arith.constant 0 : i32
    %c0_i32_0 = arith.constant 0 : i32
    %c0_i32_1 = arith.constant 0 : i32
    return %c0_i32, %c0_i32_0 : i32, i32
  }
  func.func @transform_8(%arg0: i32) -> (i32, i32) {
    %c0_i32 = arith.constant 0 : i32
    %c0_i32_0 = arith.constant 0 : i32
    %c0_i32_1 = arith.constant 0 : i32
    return %c0_i32, %c0_i32_0 : i32, i32
  }
  func.func @transform_9(%arg0: i32) -> (i32, i32) {
    %c0_i32 = arith.constant 0 : i32
    %c0_i32_0 = arith.constant 0 : i32
    %c0_i32_1 = arith.constant 0 : i32
    return %c0_i32, %c0_i32_0 : i32, i32
  }
  func.func @transform_10(%arg0: i32) -> (i32, i32) {
    %c0_i32 = arith.constant 0 : i32
    %c0_i32_0 = arith.constant 0 : i32
    return %arg0, %c0_i32 : i32, i32
  }
}

</mosaic_0001>

<llo_original>
// kernel: tpu_custom_call.1
$region0: #{tpu_custom_call.1}
  #allocation0 [shape = 'u32[]', space=smem, size = 0x4, offset = 0x4, fixed_abs, tag = 'smem constant byte address 0x4 - core index']
  #allocation1 [shape = 'u32[144,128]{1,0:T(1,128)}', space=vmem, size = 0x12000, scoped, tag = 'internal scratch']
  %s0 = inlined_call_operand.hbm [shape: f32[16,32], index: 0, kind: input, shape index: {}]
  %s1 = inlined_call_operand.hbm [shape: f32[16,32], index: 1, kind: input, shape index: {}]
  %s2 = inlined_call_operand.hbm [shape: f32[16,32], index: 2, kind: input, shape index: {}]
  %s3 = inlined_call_operand.vmem [shape: f32[32,64], index: 3, kind: input, shape index: {}]
  %s4 = inlined_call_operand.vmem [shape: f32[1,64], index: 4, kind: input, shape index: {}]
  %s5 = inlined_call_operand.vmem [shape: f32[32,64], index: 5, kind: input, shape index: {}]
  %s6 = inlined_call_operand.vmem [shape: f32[32,64], index: 6, kind: input, shape index: {}]
  %s7 = inlined_call_operand.vmem [shape: f32[1,64], index: 7, kind: input, shape index: {}]
  %s8 = inlined_call_operand.vmem [shape: f32[64,32], index: 8, kind: input, shape index: {}]
  %s9 = inlined_call_operand.vmem [shape: f32[1,32], index: 9, kind: input, shape index: {}]
  %s10 = inlined_call_operand.hbm [shape: f32[16,32], index: 10, kind: output, shape index: {}]
  %s11 = sld [smem:[#allocation0]]
  $region62: #{tpu_custom_call.1} parent=0
    _
  %s13 = ssub.s32 1, %s11
  %s14 = scalar_select 0, %s13, %s11
  $region1: #{tpu_custom_call.1} parent=0
    #allocation2 [shape = 'u8[8192]{0}', space=vmem, size = 0x2000, scoped, tag = 'input window, operand 0, single buffered']
    #allocation3 [shape = 's32[1]{0}', space=sflag, size = 0x4, scoped, tag = 'scoped memory for tpu_custom_call.1']
    #allocation4 [shape = 's32[1]{0}', space=sflag, size = 0x4, scoped, tag = 'scoped memory for tpu_custom_call.1']
    #allocation5 [shape = 'u8[8192]{0}', space=vmem, size = 0x2000, scoped, tag = 'input window, operand 1, single buffered']
    #allocation6 [shape = 's32[1]{0}', space=sflag, size = 0x4, scoped, tag = 'scoped memory for tpu_custom_call.1']
    #allocation7 [shape = 'u8[8192]{0}', space=vmem, size = 0x2000, scoped, tag = 'input window, operand 2, single buffered']
    #allocation8 [shape = 'u8[8192]{0}', space=vmem, size = 0x2000, scoped, tag = 'output window, operand 0, single buffered']
    %15 = vsyncpa [#allocation3], 0
    %16 = vsyncpa [#allocation6], 0
    %17 = vsyncpa [#allocation4], 0
    // Predicated region
    $region2: #{tpu_custom_call.1} parent=1 // pred_check
      _
    $region3: #{tpu_custom_call.1} parent=1 // pred_check_branch
      %19 = sbr.rel (0) target = $region5
    $region4: #{tpu_custom_call.1} parent=1 // pred_region
      %s21 = ssub.s32 256, 256
      %22 = vsyncadd [#allocation3], %s21
      %s23 = sshll.u32 [#allocation2], 4
      %s24 = int_to_ptr.vmem [resolvable:$true] %s23
      %29 = dma.hbm_to_vmem [thread:$0]  %s0, 256, %s24, [#allocation3], 128, 128, 8
    $region5: #{tpu_custom_call.1} parent=1 // pred_fallthru
      _
    // Predicated region
    $region6: #{tpu_custom_call.1} parent=1 // pred_check
      _
    $region7: #{tpu_custom_call.1} parent=1 // pred_check_branch
      %31 = sbr.rel (0) target = $region9
    $region8: #{tpu_custom_call.1} parent=1 // pred_region
      %s33 = ssub.s32 256, 256
      %34 = vsyncadd [#allocation6], %s33
      %s35 = sshll.u32 [#allocation5], 4
      %s36 = int_to_ptr.vmem [resolvable:$true] %s35
      %41 = dma.hbm_to_vmem [thread:$0]  %s1, 256, %s36, [#allocation6], 128, 128, 8
    $region9: #{tpu_custom_call.1} parent=1 // pred_fallthru
      _
    // Predicated region
    $region10: #{tpu_custom_call.1} parent=1 // pred_check
      _
    $region11: #{tpu_custom_call.1} parent=1 // pred_check_branch
      %43 = sbr.rel (0) target = $region13
    $region12: #{tpu_custom_call.1} parent=1 // pred_region
      %s45 = ssub.s32 256, 256
      %46 = vsyncadd [#allocation6], %s45
      %s47 = sshll.u32 [#allocation7], 4
      %s48 = int_to_ptr.vmem [resolvable:$true] %s47
      %53 = dma.hbm_to_vmem [thread:$0]  %s2, 256, %s48, [#allocation6], 128, 128, 8
    $region13: #{tpu_custom_call.1} parent=1 // pred_fallthru
      _
    // Predicated region
    $region14: #{tpu_custom_call.1} parent=1 // pred_check
      _
    $region15: #{tpu_custom_call.1} parent=1 // pred_check_branch
      %55 = sbr.rel (0) target = $region17
    $region16: #{tpu_custom_call.1} parent=1 // pred_region
      _
    $region17: #{tpu_custom_call.1} parent=1 // pred_fallthru
      _
    // Predicated region
    $region18: #{tpu_custom_call.1} parent=1 // pred_check
      _
    $region19: #{tpu_custom_call.1} parent=1 // pred_check_branch
      %57 = sbr.rel (0) target = $region21
    $region20: #{tpu_custom_call.1} parent=1 // pred_region
      _
    $region21: #{tpu_custom_call.1} parent=1 // pred_fallthru
      _
    // Predicated region
    $region22: #{tpu_custom_call.1} parent=1 // pred_check
      _
    $region23: #{tpu_custom_call.1} parent=1 // pred_check_branch
      %59 = sbr.rel (0) target = $region25
    $region24: #{tpu_custom_call.1} parent=1 // pred_region
      _
    $region25: #{tpu_custom_call.1} parent=1 // pred_fallthru
      _
    // Predicated region
    $region26: #{tpu_custom_call.1} parent=1 // pred_check
      _
    $region27: #{tpu_custom_call.1} parent=1 // pred_check_branch
      %61 = sbr.rel (0) target = $region29
    $region28: #{tpu_custom_call.1} parent=1 // pred_region
      _
    $region29: #{tpu_custom_call.1} parent=1 // pred_fallthru
      _
    // Predicated region
    $region30: #{tpu_custom_call.1} parent=1 // pred_check
      _
    $region31: #{tpu_custom_call.1} parent=1 // pred_check_branch
      %63 = sbr.rel (0) target = $region33
    $region32: #{tpu_custom_call.1} parent=1 // pred_region
      _
    $region33: #{tpu_custom_call.1} parent=1 // pred_fallthru
      _
    // Predicated region
    $region34: #{tpu_custom_call.1} parent=1 // pred_check
      _
    $region35: #{tpu_custom_call.1} parent=1 // pred_check_branch
      %65 = sbr.rel (0) target = $region37
    $region36: #{tpu_custom_call.1} parent=1 // pred_region
      _
    $region37: #{tpu_custom_call.1} parent=1 // pred_fallthru
      _
    // Predicated region
    $region38: #{tpu_custom_call.1} parent=1 // pred_check
      _
    $region39: #{tpu_custom_call.1} parent=1 // pred_check_branch
      %67 = sbr.rel (0) target = $region41
    $region40: #{tpu_custom_call.1} parent=1 // pred_region
      _
    $region41: #{tpu_custom_call.1} parent=1 // pred_fallthru
      _
    // Predicated region
    $region42: #{tpu_custom_call.1} parent=1 // pred_check
      _
    $region43: #{tpu_custom_call.1} parent=1 // pred_check_branch
      %69 = sbr.rel (0) target = $region45
    $region44: #{tpu_custom_call.1} parent=1 // pred_region
      %70 = dma.done [#allocation3], 256
    $region45: #{tpu_custom_call.1} parent=1 // pred_fallthru
      _
    // Predicated region
    $region46: #{tpu_custom_call.1} parent=1 // pred_check
      _
    $region47: #{tpu_custom_call.1} parent=1 // pred_check_branch
      %72 = sbr.rel (0) target = $region49
    $region48: #{tpu_custom_call.1} parent=1 // pred_region
      %73 = dma.done [#allocation6], 256
    $region49: #{tpu_custom_call.1} parent=1 // pred_fallthru
      _
    // Predicated region
    $region50: #{tpu_custom_call.1} parent=1 // pred_check
      _
    $region51: #{tpu_custom_call.1} parent=1 // pred_check_branch
      %75 = sbr.rel (0) target = $region53
    $region52: #{tpu_custom_call.1} parent=1 // pred_region
      %76 = dma.done [#allocation6], 256
    $region53: #{tpu_custom_call.1} parent=1 // pred_fallthru
      _
    %v77 = vld [vmem:[#allocation2] sm:$0xff]
    %v78 = vld [vmem:[#allocation2 + $0x8] sm:$0xff]
    %v79 = vld [vmem:[%s3] sm:$0xff]
    %v80 = vld [vmem:[%s3 + $0x8] sm:$0xff]
    %v81 = vld [vmem:[%s3 + $0x10] sm:$0xff]
    %v82 = vld [vmem:[%s3 + $0x18] sm:$0xff]
    %v83 = vld [vmem:[%s4] sm:$0x1]
    %v85 = vlaneseq
    %v86 = vshrl.u32 %v85, 7
    %v87 = vsub.s32 0, %v86
    %v88 = vrot.slane %v83, %v87
    %vm90 = vcmask 261120
    %v92 = vsel %vm90, %v77, 0
    %v95 = vsel %vm90, %v78, 0
    %97 = vmatprep.subr.mxu0 0.0
    %98 = vmatpush1.msra.mxu0 0.0
    %99 = vmatprep.subr.mxu0 0.0
    %100 = vmatpush1.msra.mxu0 0.0
    %101 = vmatprep.subr.mxu0 0.0
    %102 = vmatpush1.msra.mxu0 0.0
    %103 = vmatprep.subr.mxu0 0.0
    %104 = vmatpush1.msra.mxu0 0.0
    %105 = vmatprep.subr.mxu0 0.0
    %106 = vmatpush1.msra.mxu0 0.0
    %107 = vmatprep.subr.mxu0 0.0
    %108 = vmatpush1.msra.mxu0 0.0
    %109 = vmatprep.subr.mxu0 0.0
    %110 = vmatpush1.msra.mxu0 0.0
    %111 = vmatprep.subr.mxu0 0.0
    %112 = vmatpush1.msra.mxu0 0.0
    %113 = vmatprep.subr.mxu0 0.0
    %114 = vmatpush1.msra.mxu0 0.0
    %115 = vmatprep.subr.mxu0 0.0
    %116 = vmatpush1.msra.mxu0 0.0
    %117 = vmatprep.subr.mxu0 0.0
    %118 = vmatpush1.msra.mxu0 0.0
    %119 = vmatprep.subr.mxu0 0.0
    %120 = vmatpush1.msra.mxu0 0.0
    %121 = vmatprep.subr.mxu0 0.0
    %122 = vmatpush1.msra.mxu0 %v82
    %123 = vmatprep.subr.mxu0 0.0
    %124 = vmatpush1.msra.mxu0 %v81
    %125 = vmatprep.subr.mxu0 0.0
    %126 = vmatpush1.msra.mxu0 %v80
    %127 = vmatprep.subr.mxu0 0.0
    %128 = vmatpush1.msra.mxu0 %v79
    %129 = vmatprep.subr.mxu0 0.0
    %130 = vmatpush2.msra.mxu0 0.0
    %131 = vmatprep.subr.mxu0 0.0
    %132 = vmatpush2.msra.mxu0 0.0
    %133 = vmatprep.subr.mxu0 0.0
    %134 = vmatpush2.msra.mxu0 0.0
    %135 = vmatprep.subr.mxu0 0.0
    %136 = vmatpush2.msra.mxu0 0.0
    %137 = vmatprep.subr.mxu0 0.0
    %138 = vmatpush2.msra.mxu0 0.0
    %139 = vmatprep.subr.mxu0 0.0
    %140 = vmatpush2.msra.mxu0 0.0
    %141 = vmatprep.subr.mxu0 0.0
    %142 = vmatpush2.msra.mxu0 0.0
    %143 = vmatprep.subr.mxu0 0.0
    %144 = vmatpush2.msra.mxu0 0.0
    %145 = vmatprep.subr.mxu0 0.0
    %146 = vmatpush2.msra.mxu0 0.0
    %147 = vmatprep.subr.mxu0 0.0
    %148 = vmatpush2.msra.mxu0 0.0
    %149 = vmatprep.subr.mxu0 0.0
    %150 = vmatpush2.msra.mxu0 0.0
    %151 = vmatprep.subr.mxu0 0.0
    %152 = vmatpush2.msra.mxu0 0.0
    %153 = vmatprep.subr.mxu0 0.0
    %154 = vmatpush2.msra.mxu0 0.0
    %155 = vmatprep.subr.mxu0 0.0
    %156 = vmatpush2.msra.mxu0 0.0
    %157 = vmatprep.subr.mxu0 0.0
    %158 = vmatpush2.msra.mxu0 0.0
    %159 = vmatprep.subr.mxu0 0.0
    %160 = vmatpush2.msra.mxu0 0.0
    %161 = vmatprep.mubr.f32.mxu0 0.0
    %162 = vmatmul.mubr.f32.gmra.mxu0 %v92
    %v163 = vpop.f32.mrf.mxu0
    %v164 = vadd.f32 %v88, %v163
    %v165 = vpop.f32.mrf.mxu0
    %166 = vmatprep.mubr.f32.mxu0 0.0
    %167 = vmatmul.mubr.f32.gmra.mxu0 %v95
    %v168 = vpop.f32.mrf.mxu0
    %v169 = vadd.f32 %v88, %v168
    %v170 = vpop.f32.mrf.mxu0
    %171 = vdwg.mxu0
    %v172 = vld [vmem:[#allocation5] sm:$0xff]
    %v173 = vld [vmem:[#allocation5 + $0x8] sm:$0xff]
    %v174 = vld [vmem:[%s5] sm:$0xff]
    %v175 = vld [vmem:[%s5 + $0x8] sm:$0xff]
    %v176 = vld [vmem:[%s5 + $0x10] sm:$0xff]
    %v177 = vld [vmem:[%s5 + $0x18] sm:$0xff]
    %v179 = vsel %vm90, %v172, 0
    %v182 = vsel %vm90, %v173, 0
    %184 = vmatprep.subr.mxu0 0.0
    %185 = vmatpush1.msra.mxu0 0.0
    %186 = vmatprep.subr.mxu0 0.0
    %187 = vmatpush1.msra.mxu0 0.0
    %188 = vmatprep.subr.mxu0 0.0
    %189 = vmatpush1.msra.mxu0 0.0
    %190 = vmatprep.subr.mxu0 0.0
    %191 = vmatpush1.msra.mxu0 0.0
    %192 = vmatprep.subr.mxu0 0.0
    %193 = vmatpush1.msra.mxu0 0.0
    %194 = vmatprep.subr.mxu0 0.0
    %195 = vmatpush1.msra.mxu0 0.0
    %196 = vmatprep.subr.mxu0 0.0
    %197 = vmatpush1.msra.mxu0 0.0
    %198 = vmatprep.subr.mxu0 0.0
    %199 = vmatpush1.msra.mxu0 0.0
    %200 = vmatprep.subr.mxu0 0.0
    %201 = vmatpush1.msra.mxu0 0.0
    %202 = vmatprep.subr.mxu0 0.0
    %203 = vmatpush1.msra.mxu0 0.0
    %204 = vmatprep.subr.mxu0 0.0
    %205 = vmatpush1.msra.mxu0 0.0
    %206 = vmatprep.subr.mxu0 0.0
    %207 = vmatpush1.msra.mxu0 0.0
    %208 = vmatprep.subr.mxu0 0.0
    %209 = vmatpush1.msra.mxu0 %v177
    %210 = vmatprep.subr.mxu0 0.0
    %211 = vmatpush1.msra.mxu0 %v176
    %212 = vmatprep.subr.mxu0 0.0
    %213 = vmatpush1.msra.mxu0 %v175
    %214 = vmatprep.subr.mxu0 0.0
    %215 = vmatpush1.msra.mxu0 %v174
    %216 = vmatprep.subr.mxu0 0.0
    %217 = vmatpush2.msra.mxu0 0.0
    %218 = vmatprep.subr.mxu0 0.0
    %219 = vmatpush2.msra.mxu0 0.0
    %220 = vmatprep.subr.mxu0 0.0
    %221 = vmatpush2.msra.mxu0 0.0
    %222 = vmatprep.subr.mxu0 0.0
    %223 = vmatpush2.msra.mxu0 0.0
    %224 = vmatprep.subr.mxu0 0.0
    %225 = vmatpush2.msra.mxu0 0.0
    %226 = vmatprep.subr.mxu0 0.0
    %227 = vmatpush2.msra.mxu0 0.0
    %228 = vmatprep.subr.mxu0 0.0
    %229 = vmatpush2.msra.mxu0 0.0
    %230 = vmatprep.subr.mxu0 0.0
    %231 = vmatpush2.msra.mxu0 0.0
    %232 = vmatprep.subr.mxu0 0.0
    %233 = vmatpush2.msra.mxu0 0.0
    %234 = vmatprep.subr.mxu0 0.0
    %235 = vmatpush2.msra.mxu0 0.0
    %236 = vmatprep.subr.mxu0 0.0
    %237 = vmatpush2.msra.mxu0 0.0
    %238 = vmatprep.subr.mxu0 0.0
    %239 = vmatpush2.msra.mxu0 0.0
    %240 = vmatprep.subr.mxu0 0.0
    %241 = vmatpush2.msra.mxu0 0.0
    %242 = vmatprep.subr.mxu0 0.0
    %243 = vmatpush2.msra.mxu0 0.0
    %244 = vmatprep.subr.mxu0 0.0
    %245 = vmatpush2.msra.mxu0 0.0
    %246 = vmatprep.subr.mxu0 0.0
    %247 = vmatpush2.msra.mxu0 0.0
    %248 = vmatprep.mubr.f32.mxu0 0.0
    %249 = vmatmul.mubr.f32.gmra.mxu0 %v179
    %v250 = vpop.f32.mrf.mxu0
    %v251 = vadd.f32 0.0, %v250
    %v252 = vpop.f32.mrf.mxu0
    %253 = vmatprep.mubr.f32.mxu0 0.0
    %254 = vmatmul.mubr.f32.gmra.mxu0 %v182
    %v255 = vpop.f32.mrf.mxu0
    %v256 = vadd.f32 0.0, %v255
    %v257 = vpop.f32.mrf.mxu0
    %258 = vdwg.mxu0
    %v259 = vld [vmem:[#allocation7] sm:$0xff]
    %v260 = vld [vmem:[#allocation7 + $0x8] sm:$0xff]
    %v261 = vld [vmem:[%s6] sm:$0xff]
    %v262 = vld [vmem:[%s6 + $0x8] sm:$0xff]
    %v263 = vld [vmem:[%s6 + $0x10] sm:$0xff]
    %v264 = vld [vmem:[%s6 + $0x18] sm:$0xff]
    %v265 = vld [vmem:[%s7] sm:$0x1]
    %v267 = vlaneseq
    %v268 = vshrl.u32 %v267, 7
    %v269 = vsub.s32 0, %v268
    %v270 = vrot.slane %v265, %v269
    %v273 = vsel %vm90, %v259, 0
    %v276 = vsel %vm90, %v260, 0
    %278 = vmatprep.subr.mxu0 0.0
    %279 = vmatpush1.msra.mxu0 0.0
    %280 = vmatprep.subr.mxu0 0.0
    %281 = vmatpush1.msra.mxu0 0.0
    %282 = vmatprep.subr.mxu0 0.0
    %283 = vmatpush1.msra.mxu0 0.0
    %284 = vmatprep.subr.mxu0 0.0
    %285 = vmatpush1.msra.mxu0 0.0
    %286 = vmatprep.subr.mxu0 0.0
    %287 = vmatpush1.msra.mxu0 0.0
    %288 = vmatprep.subr.mxu0 0.0
    %289 = vmatpush1.msra.mxu0 0.0
    %290 = vmatprep.subr.mxu0 0.0
    %291 = vmatpush1.msra.mxu0 0.0
    %292 = vmatprep.subr.mxu0 0.0
    %293 = vmatpush1.msra.mxu0 0.0
    %294 = vmatprep.subr.mxu0 0.0
    %295 = vmatpush1.msra.mxu0 0.0
    %296 = vmatprep.subr.mxu0 0.0
    %297 = vmatpush1.msra.mxu0 0.0
    %298 = vmatprep.subr.mxu0 0.0
    %299 = vmatpush1.msra.mxu0 0.0
    %300 = vmatprep.subr.mxu0 0.0
    %301 = vmatpush1.msra.mxu0 0.0
    %302 = vmatprep.subr.mxu0 0.0
    %303 = vmatpush1.msra.mxu0 %v264
    %304 = vmatprep.subr.mxu0 0.0
    %305 = vmatpush1.msra.mxu0 %v263
    %306 = vmatprep.subr.mxu0 0.0
    %307 = vmatpush1.msra.mxu0 %v262
    %308 = vmatprep.subr.mxu0 0.0
    %309 = vmatpush1.msra.mxu0 %v261
    %310 = vmatprep.subr.mxu0 0.0
    %311 = vmatpush2.msra.mxu0 0.0
    %312 = vmatprep.subr.mxu0 0.0
    %313 = vmatpush2.msra.mxu0 0.0
    %314 = vmatprep.subr.mxu0 0.0
    %315 = vmatpush2.msra.mxu0 0.0
    %316 = vmatprep.subr.mxu0 0.0
    %317 = vmatpush2.msra.mxu0 0.0
    %318 = vmatprep.subr.mxu0 0.0
    %319 = vmatpush2.msra.mxu0 0.0
    %320 = vmatprep.subr.mxu0 0.0
    %321 = vmatpush2.msra.mxu0 0.0
    %322 = vmatprep.subr.mxu0 0.0
    %323 = vmatpush2.msra.mxu0 0.0
    %324 = vmatprep.subr.mxu0 0.0
    %325 = vmatpush2.msra.mxu0 0.0
    %326 = vmatprep.subr.mxu0 0.0
    %327 = vmatpush2.msra.mxu0 0.0
    %328 = vmatprep.subr.mxu0 0.0
    %329 = vmatpush2.msra.mxu0 0.0
    %330 = vmatprep.subr.mxu0 0.0
    %331 = vmatpush2.msra.mxu0 0.0
    %332 = vmatprep.subr.mxu0 0.0
    %333 = vmatpush2.msra.mxu0 0.0
    %334 = vmatprep.subr.mxu0 0.0
    %335 = vmatpush2.msra.mxu0 0.0
    %336 = vmatprep.subr.mxu0 0.0
    %337 = vmatpush2.msra.mxu0 0.0
    %338 = vmatprep.subr.mxu0 0.0
    %339 = vmatpush2.msra.mxu0 0.0
    %340 = vmatprep.subr.mxu0 0.0
    %341 = vmatpush2.msra.mxu0 0.0
    %342 = vmatprep.mubr.f32.mxu0 0.0
    %343 = vmatmul.mubr.f32.gmra.mxu0 %v273
    %v344 = vpop.f32.mrf.mxu0
    %v345 = vadd.f32 %v270, %v344
    %v346 = vpop.f32.mrf.mxu0
    %347 = vmatprep.mubr.f32.mxu0 0.0
    %348 = vmatmul.mubr.f32.gmra.mxu0 %v276
    %v349 = vpop.f32.mrf.mxu0
    %v350 = vadd.f32 %v270, %v349
    %v351 = vpop.f32.mrf.mxu0
    %352 = vdwg.mxu0
    %v353 = vld [vmem:[%s8] sm:$0xff]
    %v354 = vld [vmem:[%s8 + $0x8] sm:$0xff]
    %v355 = vld [vmem:[%s8 + $0x10] sm:$0xff]
    %v356 = vld [vmem:[%s8 + $0x18] sm:$0xff]
    %v357 = vld [vmem:[%s8 + $0x20] sm:$0xff]
    %v358 = vld [vmem:[%s8 + $0x28] sm:$0xff]
    %v359 = vld [vmem:[%s8 + $0x30] sm:$0xff]
    %v360 = vld [vmem:[%s8 + $0x38] sm:$0xff]
    %vm361 = vcmask 130048
    %v363 = vsel %vm361, %v164, 0
    %v366 = vsel %vm361, %v251, 0
    %368 = vmatprep.subr.mxu0 0.0
    %369 = vmatpush1.xpose.msra.mxu0 0.0
    %370 = vmatprep.subr.mxu0 0.0
    %371 = vmatpush1.xpose.msra.mxu0 0.0
    %372 = vmatprep.subr.mxu0 0.0
    %373 = vmatpush1.xpose.msra.mxu0 0.0
    %374 = vmatprep.subr.mxu0 0.0
    %375 = vmatpush1.xpose.msra.mxu0 0.0
    %376 = vmatprep.subr.mxu0 0.0
    %377 = vmatpush1.xpose.msra.mxu0 0.0
    %378 = vmatprep.subr.mxu0 0.0
    %379 = vmatpush1.xpose.msra.mxu0 0.0
    %380 = vmatprep.subr.mxu0 0.0
    %381 = vmatpush1.xpose.msra.mxu0 0.0
    %382 = vmatprep.subr.mxu0 0.0
    %383 = vmatpush1.xpose.msra.mxu0 0.0
    %384 = vmatprep.subr.mxu0 0.0
    %385 = vmatpush1.xpose.msra.mxu0 0.0
    %386 = vmatprep.subr.mxu0 0.0
    %387 = vmatpush1.xpose.msra.mxu0 0.0
    %388 = vmatprep.subr.mxu0 0.0
    %389 = vmatpush1.xpose.msra.mxu0 0.0
    %390 = vmatprep.subr.mxu0 0.0
    %391 = vmatpush1.xpose.msra.mxu0 0.0
    %392 = vmatprep.subr.mxu0 0.0
    %393 = vmatpush1.xpose.msra.mxu0 0.0
    %394 = vmatprep.subr.mxu0 0.0
    %395 = vmatpush1.xpose.msra.mxu0 0.0
    %396 = vmatprep.subr.mxu0 0.0
    %397 = vmatpush1.xpose.msra.mxu0 0.0
    %398 = vmatprep.subr.mxu0 0.0
    %399 = vmatpush1.xpose.msra.mxu0 %v366
    %400 = vmatprep.subr.mxu0 0.0
    %401 = vmatpush2.xpose.msra.mxu0 0.0
    %402 = vmatprep.subr.mxu0 0.0
    %403 = vmatpush2.xpose.msra.mxu0 0.0
    %404 = vmatprep.subr.mxu0 0.0
    %405 = vmatpush2.xpose.msra.mxu0 0.0
    %406 = vmatprep.subr.mxu0 0.0
    %407 = vmatpush2.xpose.msra.mxu0 0.0
    %408 = vmatprep.subr.mxu0 0.0
    %409 = vmatpush2.xpose.msra.mxu0 0.0
    %410 = vmatprep.subr.mxu0 0.0
    %411 = vmatpush2.xpose.msra.mxu0 0.0
    %412 = vmatprep.subr.mxu0 0.0
    %413 = vmatpush2.xpose.msra.mxu0 0.0
    %414 = vmatprep.subr.mxu0 0.0
    %415 = vmatpush2.xpose.msra.mxu0 0.0
    %416 = vmatprep.subr.mxu0 0.0
    %417 = vmatpush2.xpose.msra.mxu0 0.0
    %418 = vmatprep.subr.mxu0 0.0
    %419 = vmatpush2.xpose.msra.mxu0 0.0
    %420 = vmatprep.subr.mxu0 0.0
    %421 = vmatpush2.xpose.msra.mxu0 0.0
    %422 = vmatprep.subr.mxu0 0.0
    %423 = vmatpush2.xpose.msra.mxu0 0.0
    %424 = vmatprep.subr.mxu0 0.0
    %425 = vmatpush2.xpose.msra.mxu0 0.0
    %426 = vmatprep.subr.mxu0 0.0
    %427 = vmatpush2.xpose.msra.mxu0 0.0
    %428 = vmatprep.subr.mxu0 0.0
    %429 = vmatpush2.xpose.msra.mxu0 0.0
    %430 = vmatprep.subr.mxu0 0.0
    %431 = vmatpush2.xpose.msra.mxu0 0.0
    %432 = vmatprep.mubr.f32.mxu0 0.0
    %433 = vmatmul.mubr.f32.gmra.mxu0 %v363
    %v434 = vpop.f32.mrf.mxu0
    %v435 = vadd.f32 0.0, %v434
    %v436 = vpop.f32.mrf.mxu0
    %437 = vdwg.mxu0
    %v439 = vsel %vm361, %v169, 0
    %v442 = vsel %vm361, %v256, 0
    %444 = vmatprep.subr.mxu0 0.0
    %445 = vmatpush1.xpose.msra.mxu0 0.0
    %446 = vmatprep.subr.mxu0 0.0
    %447 = vmatpush1.xpose.msra.mxu0 0.0
    %448 = vmatprep.subr.mxu0 0.0
    %449 = vmatpush1.xpose.msra.mxu0 0.0
    %450 = vmatprep.subr.mxu0 0.0
    %451 = vmatpush1.xpose.msra.mxu0 0.0
    %452 = vmatprep.subr.mxu0 0.0
    %453 = vmatpush1.xpose.msra.mxu0 0.0
    %454 = vmatprep.subr.mxu0 0.0
    %455 = vmatpush1.xpose.msra.mxu0 0.0
    %456 = vmatprep.subr.mxu0 0.0
    %457 = vmatpush1.xpose.msra.mxu0 0.0
    %458 = vmatprep.subr.mxu0 0.0
    %459 = vmatpush1.xpose.msra.mxu0 0.0
    %460 = vmatprep.subr.mxu0 0.0
    %461 = vmatpush1.xpose.msra.mxu0 0.0
    %462 = vmatprep.subr.mxu0 0.0
    %463 = vmatpush1.xpose.msra.mxu0 0.0
    %464 = vmatprep.subr.mxu0 0.0
    %465 = vmatpush1.xpose.msra.mxu0 0.0
    %466 = vmatprep.subr.mxu0 0.0
    %467 = vmatpush1.xpose.msra.mxu0 0.0
    %468 = vmatprep.subr.mxu0 0.0
    %469 = vmatpush1.xpose.msra.mxu0 0.0
    %470 = vmatprep.subr.mxu0 0.0
    %471 = vmatpush1.xpose.msra.mxu0 0.0
    %472 = vmatprep.subr.mxu0 0.0
    %473 = vmatpush1.xpose.msra.mxu0 0.0
    %474 = vmatprep.subr.mxu0 0.0
    %475 = vmatpush1.xpose.msra.mxu0 %v442
    %476 = vmatprep.subr.mxu0 0.0
    %477 = vmatpush2.xpose.msra.mxu0 0.0
    %478 = vmatprep.subr.mxu0 0.0
    %479 = vmatpush2.xpose.msra.mxu0 0.0
    %480 = vmatprep.subr.mxu0 0.0
    %481 = vmatpush2.xpose.msra.mxu0 0.0
    %482 = vmatprep.subr.mxu0 0.0
    %483 = vmatpush2.xpose.msra.mxu0 0.0
    %484 = vmatprep.subr.mxu0 0.0
    %485 = vmatpush2.xpose.msra.mxu0 0.0
    %486 = vmatprep.subr.mxu0 0.0
    %487 = vmatpush2.xpose.msra.mxu0 0.0
    %488 = vmatprep.subr.mxu0 0.0
    %489 = vmatpush2.xpose.msra.mxu0 0.0
    %490 = vmatprep.subr.mxu0 0.0
    %491 = vmatpush2.xpose.msra.mxu0 0.0
    %492 = vmatprep.subr.mxu0 0.0
    %493 = vmatpush2.xpose.msra.mxu0 0.0
    %494 = vmatprep.subr.mxu0 0.0
    %495 = vmatpush2.xpose.msra.mxu0 0.0
    %496 = vmatprep.subr.mxu0 0.0
    %497 = vmatpush2.xpose.msra.mxu0 0.0
    %498 = vmatprep.subr.mxu0 0.0
    %499 = vmatpush2.xpose.msra.mxu0 0.0
    %500 = vmatprep.subr.mxu0 0.0
    %501 = vmatpush2.xpose.msra.mxu0 0.0
    %502 = vmatprep.subr.mxu0 0.0
    %503 = vmatpush2.xpose.msra.mxu0 0.0
    %504 = vmatprep.subr.mxu0 0.0
    %505 = vmatpush2.xpose.msra.mxu0 0.0
    %506 = vmatprep.subr.mxu0 0.0
    %507 = vmatpush2.xpose.msra.mxu0 0.0
    %508 = vmatprep.mubr.f32.mxu0 0.0
    %509 = vmatmul.mubr.f32.gmra.mxu0 %v439
    %v510 = vpop.f32.mrf.mxu0
    %v511 = vadd.f32 0.0, %v510
    %v512 = vpop.f32.mrf.mxu0
    %513 = vdwg.mxu0
    %vm514 = vcmask 64512
    %v515 = vsel %vm514, %v435, -inf
    %516 = vmax.xlane.f32.xlu0 %v515
    %v517 = vpop.xlane.xlu0 %516
    %v518 = vsel %vm514, %v511, -inf
    %519 = vmax.xlane.f32.xlu0 %v518
    %v520 = vpop.xlane.xlu0 %519
    %v521 = vsub.f32 %v435, %v517
    %v522 = vsub.f32 %v511, %v520
    %v523 = vmul.f32 %v521, 1.442695
    %v524 = vpow.pop %v523
    %v525 = vmul.f32 %v522, 1.442695
    %v526 = vpow.pop %v525
    %v527 = vsel %vm514, %v524, 0.0
    %528 = vadd.xlane.f32.xlu0 %v527
    %v529 = vpop.xlane.xlu0 %528
    %v530 = vsel %vm514, %v526, 0.0
    %531 = vadd.xlane.f32.xlu0 %v530
    %v532 = vpop.xlane.xlu0 %531
    %v533 = vrcp.pop %v529
    %v534 = vmul.f32 %v524, %v533
    %v535 = vrcp.pop %v532
    %v536 = vmul.f32 %v526, %v535
    %v538 = vsel %vm514, %v534, 0
    %540 = vmatprep.subr.mxu0 0.0
    %541 = vmatpush1.msra.mxu0 0.0
    %542 = vmatprep.subr.mxu0 0.0
    %543 = vmatpush1.msra.mxu0 0.0
    %544 = vmatprep.subr.mxu0 0.0
    %545 = vmatpush1.msra.mxu0 0.0
    %546 = vmatprep.subr.mxu0 0.0
    %547 = vmatpush1.msra.mxu0 0.0
    %548 = vmatprep.subr.mxu0 0.0
    %549 = vmatpush1.msra.mxu0 0.0
    %550 = vmatprep.subr.mxu0 0.0
    %551 = vmatpush1.msra.mxu0 0.0
    %552 = vmatprep.subr.mxu0 0.0
    %553 = vmatpush1.msra.mxu0 0.0
    %554 = vmatprep.subr.mxu0 0.0
    %555 = vmatpush1.msra.mxu0 0.0
    %556 = vmatprep.subr.mxu0 0.0
    %557 = vmatpush1.msra.mxu0 0.0
    %558 = vmatprep.subr.mxu0 0.0
    %559 = vmatpush1.msra.mxu0 0.0
    %560 = vmatprep.subr.mxu0 0.0
    %561 = vmatpush1.msra.mxu0 0.0
    %562 = vmatprep.subr.mxu0 0.0
    %563 = vmatpush1.msra.mxu0 0.0
    %564 = vmatprep.subr.mxu0 0.0
    %565 = vmatpush1.msra.mxu0 0.0
    %566 = vmatprep.subr.mxu0 0.0
    %567 = vmatpush1.msra.mxu0 0.0
    %568 = vmatprep.subr.mxu0 0.0
    %569 = vmatpush1.msra.mxu0 0.0
    %570 = vmatprep.subr.mxu0 0.0
    %571 = vmatpush1.msra.mxu0 %v345
    %572 = vmatprep.subr.mxu0 0.0
    %573 = vmatpush2.msra.mxu0 0.0
    %574 = vmatprep.subr.mxu0 0.0
    %575 = vmatpush2.msra.mxu0 0.0
    %576 = vmatprep.subr.mxu0 0.0
    %577 = vmatpush2.msra.mxu0 0.0
    %578 = vmatprep.subr.mxu0 0.0
    %579 = vmatpush2.msra.mxu0 0.0
    %580 = vmatprep.subr.mxu0 0.0
    %581 = vmatpush2.msra.mxu0 0.0
    %582 = vmatprep.subr.mxu0 0.0
    %583 = vmatpush2.msra.mxu0 0.0
    %584 = vmatprep.subr.mxu0 0.0
    %585 = vmatpush2.msra.mxu0 0.0
    %586 = vmatprep.subr.mxu0 0.0
    %587 = vmatpush2.msra.mxu0 0.0
    %588 = vmatprep.subr.mxu0 0.0
    %589 = vmatpush2.msra.mxu0 0.0
    %590 = vmatprep.subr.mxu0 0.0
    %591 = vmatpush2.msra.mxu0 0.0
    %592 = vmatprep.subr.mxu0 0.0
    %593 = vmatpush2.msra.mxu0 0.0
    %594 = vmatprep.subr.mxu0 0.0
    %595 = vmatpush2.msra.mxu0 0.0
    %596 = vmatprep.subr.mxu0 0.0
    %597 = vmatpush2.msra.mxu0 0.0
    %598 = vmatprep.subr.mxu0 0.0
    %599 = vmatpush2.msra.mxu0 0.0
    %600 = vmatprep.subr.mxu0 0.0
    %601 = vmatpush2.msra.mxu0 0.0
    %602 = vmatprep.subr.mxu0 0.0
    %603 = vmatpush2.msra.mxu0 0.0
    %604 = vmatprep.mubr.f32.mxu0 0.0
    %605 = vmatmul.mubr.f32.gmra.mxu0 %v538
    %v606 = vpop.f32.mrf.mxu0
    %v607 = vadd.f32 0.0, %v606
    %v608 = vpop.f32.mrf.mxu0
    %609 = vdwg.mxu0
    %v611 = vsel %vm514, %v536, 0
    %613 = vmatprep.subr.mxu0 0.0
    %614 = vmatpush1.msra.mxu0 0.0
    %615 = vmatprep.subr.mxu0 0.0
    %616 = vmatpush1.msra.mxu0 0.0
    %617 = vmatprep.subr.mxu0 0.0
    %618 = vmatpush1.msra.mxu0 0.0
    %619 = vmatprep.subr.mxu0 0.0
    %620 = vmatpush1.msra.mxu0 0.0
    %621 = vmatprep.subr.mxu0 0.0
    %622 = vmatpush1.msra.mxu0 0.0
    %623 = vmatprep.subr.mxu0 0.0
    %624 = vmatpush1.msra.mxu0 0.0
    %625 = vmatprep.subr.mxu0 0.0
    %626 = vmatpush1.msra.mxu0 0.0
    %627 = vmatprep.subr.mxu0 0.0
    %628 = vmatpush1.msra.mxu0 0.0
    %629 = vmatprep.subr.mxu0 0.0
    %630 = vmatpush1.msra.mxu0 0.0
    %631 = vmatprep.subr.mxu0 0.0
    %632 = vmatpush1.msra.mxu0 0.0
    %633 = vmatprep.subr.mxu0 0.0
    %634 = vmatpush1.msra.mxu0 0.0
    %635 = vmatprep.subr.mxu0 0.0
    %636 = vmatpush1.msra.mxu0 0.0
    %637 = vmatprep.subr.mxu0 0.0
    %638 = vmatpush1.msra.mxu0 0.0
    %639 = vmatprep.subr.mxu0 0.0
    %640 = vmatpush1.msra.mxu0 0.0
    %641 = vmatprep.subr.mxu0 0.0
    %642 = vmatpush1.msra.mxu0 0.0
    %643 = vmatprep.subr.mxu0 0.0
    %644 = vmatpush1.msra.mxu0 %v350
    %645 = vmatprep.subr.mxu0 0.0
    %646 = vmatpush2.msra.mxu0 0.0
    %647 = vmatprep.subr.mxu0 0.0
    %648 = vmatpush2.msra.mxu0 0.0
    %649 = vmatprep.subr.mxu0 0.0
    %650 = vmatpush2.msra.mxu0 0.0
    %651 = vmatprep.subr.mxu0 0.0
    %652 = vmatpush2.msra.mxu0 0.0
    %653 = vmatprep.subr.mxu0 0.0
    %654 = vmatpush2.msra.mxu0 0.0
    %655 = vmatprep.subr.mxu0 0.0
    %656 = vmatpush2.msra.mxu0 0.0
    %657 = vmatprep.subr.mxu0 0.0
    %658 = vmatpush2.msra.mxu0 0.0
    %659 = vmatprep.subr.mxu0 0.0
    %660 = vmatpush2.msra.mxu0 0.0
    %661 = vmatprep.subr.mxu0 0.0
    %662 = vmatpush2.msra.mxu0 0.0
    %663 = vmatprep.subr.mxu0 0.0
    %664 = vmatpush2.msra.mxu0 0.0
    %665 = vmatprep.subr.mxu0 0.0
    %666 = vmatpush2.msra.mxu0 0.0
    %667 = vmatprep.subr.mxu0 0.0
    %668 = vmatpush2.msra.mxu0 0.0
    %669 = vmatprep.subr.mxu0 0.0
    %670 = vmatpush2.msra.mxu0 0.0
    %671 = vmatprep.subr.mxu0 0.0
    %672 = vmatpush2.msra.mxu0 0.0
    %673 = vmatprep.subr.mxu0 0.0
    %674 = vmatpush2.msra.mxu0 0.0
    %675 = vmatprep.subr.mxu0 0.0
    %676 = vmatpush2.msra.mxu0 0.0
    %677 = vmatprep.mubr.f32.mxu0 0.0
    %678 = vmatmul.mubr.f32.gmra.mxu0 %v611
    %v679 = vpop.f32.mrf.mxu0
    %v680 = vadd.f32 0.0, %v679
    %v681 = vpop.f32.mrf.mxu0
    %682 = vdwg.mxu0
    %683 = vrot.lane.b32.xlu0 %v164, 112
    %v684 = vpop.permute.xlu0 %683
    %685 = vrot.lane.b32.xlu0 %v251, 112
    %v686 = vpop.permute.xlu0 %685
    %v687 = vsel %vm361, %v684, 0
    %v689 = vsel %vm361, %v686, 0
    %691 = vmatprep.subr.mxu0 0.0
    %692 = vmatpush1.xpose.msra.mxu0 0.0
    %693 = vmatprep.subr.mxu0 0.0
    %694 = vmatpush1.xpose.msra.mxu0 0.0
    %695 = vmatprep.subr.mxu0 0.0
    %696 = vmatpush1.xpose.msra.mxu0 0.0
    %697 = vmatprep.subr.mxu0 0.0
    %698 = vmatpush1.xpose.msra.mxu0 0.0
    %699 = vmatprep.subr.mxu0 0.0
    %700 = vmatpush1.xpose.msra.mxu0 0.0
    %701 = vmatprep.subr.mxu0 0.0
    %702 = vmatpush1.xpose.msra.mxu0 0.0
    %703 = vmatprep.subr.mxu0 0.0
    %704 = vmatpush1.xpose.msra.mxu0 0.0
    %705 = vmatprep.subr.mxu0 0.0
    %706 = vmatpush1.xpose.msra.mxu0 0.0
    %707 = vmatprep.subr.mxu0 0.0
    %708 = vmatpush1.xpose.msra.mxu0 0.0
    %709 = vmatprep.subr.mxu0 0.0
    %710 = vmatpush1.xpose.msra.mxu0 0.0
    %711 = vmatprep.subr.mxu0 0.0
    %712 = vmatpush1.xpose.msra.mxu0 0.0
    %713 = vmatprep.subr.mxu0 0.0
    %714 = vmatpush1.xpose.msra.mxu0 0.0
    %715 = vmatprep.subr.mxu0 0.0
    %716 = vmatpush1.xpose.msra.mxu0 0.0
    %717 = vmatprep.subr.mxu0 0.0
    %718 = vmatpush1.xpose.msra.mxu0 0.0
    %719 = vmatprep.subr.mxu0 0.0
    %720 = vmatpush1.xpose.msra.mxu0 0.0
    %721 = vmatprep.subr.mxu0 0.0
    %722 = vmatpush1.xpose.msra.mxu0 %v689
    %723 = vmatprep.subr.mxu0 0.0
    %724 = vmatpush2.xpose.msra.mxu0 0.0
    %725 = vmatprep.subr.mxu0 0.0
    %726 = vmatpush2.xpose.msra.mxu0 0.0
    %727 = vmatprep.subr.mxu0 0.0
    %728 = vmatpush2.xpose.msra.mxu0 0.0
    %729 = vmatprep.subr.mxu0 0.0
    %730 = vmatpush2.xpose.msra.mxu0 0.0
    %731 = vmatprep.subr.mxu0 0.0
    %732 = vmatpush2.xpose.msra.mxu0 0.0
    %733 = vmatprep.subr.mxu0 0.0
    %734 = vmatpush2.xpose.msra.mxu0 0.0
    %735 = vmatprep.subr.mxu0 0.0
    %736 = vmatpush2.xpose.msra.mxu0 0.0
    %737 = vmatprep.subr.mxu0 0.0
    %738 = vmatpush2.xpose.msra.mxu0 0.0
    %739 = vmatprep.subr.mxu0 0.0
    %740 = vmatpush2.xpose.msra.mxu0 0.0
    %741 = vmatprep.subr.mxu0 0.0
    %742 = vmatpush2.xpose.msra.mxu0 0.0
    %743 = vmatprep.subr.mxu0 0.0
    %744 = vmatpush2.xpose.msra.mxu0 0.0
    %745 = vmatprep.subr.mxu0 0.0
    %746 = vmatpush2.xpose.msra.mxu0 0.0
    %747 = vmatprep.subr.mxu0 0.0
    %748 = vmatpush2.xpose.msra.mxu0 0.0
    %749 = vmatprep.subr.mxu0 0.0
    %750 = vmatpush2.xpose.msra.mxu0 0.0
    %751 = vmatprep.subr.mxu0 0.0
    %752 = vmatpush2.xpose.msra.mxu0 0.0
    %753 = vmatprep.subr.mxu0 0.0
    %754 = vmatpush2.xpose.msra.mxu0 0.0
    %755 = vmatprep.mubr.f32.mxu0 0.0
    %756 = vmatmul.mubr.f32.gmra.mxu0 %v687
    %v757 = vpop.f32.mrf.mxu0
    %v758 = vadd.f32 0.0, %v757
    %v759 = vpop.f32.mrf.mxu0
    %760 = vdwg.mxu0
    %761 = vrot.lane.b32.xlu0 %v169, 112
    %v762 = vpop.permute.xlu0 %761
    %763 = vrot.lane.b32.xlu0 %v256, 112
    %v764 = vpop.permute.xlu0 %763
    %v765 = vsel %vm361, %v762, 0
    %v767 = vsel %vm361, %v764, 0
    %769 = vmatprep.subr.mxu0 0.0
    %770 = vmatpush1.xpose.msra.mxu0 0.0
    %771 = vmatprep.subr.mxu0 0.0
    %772 = vmatpush1.xpose.msra.mxu0 0.0
    %773 = vmatprep.subr.mxu0 0.0
    %774 = vmatpush1.xpose.msra.mxu0 0.0
    %775 = vmatprep.subr.mxu0 0.0
    %776 = vmatpush1.xpose.msra.mxu0 0.0
    %777 = vmatprep.subr.mxu0 0.0
    %778 = vmatpush1.xpose.msra.mxu0 0.0
    %779 = vmatprep.subr.mxu0 0.0
    %780 = vmatpush1.xpose.msra.mxu0 0.0
    %781 = vmatprep.subr.mxu0 0.0
    %782 = vmatpush1.xpose.msra.mxu0 0.0
    %783 = vmatprep.subr.mxu0 0.0
    %784 = vmatpush1.xpose.msra.mxu0 0.0
    %785 = vmatprep.subr.mxu0 0.0
    %786 = vmatpush1.xpose.msra.mxu0 0.0
    %787 = vmatprep.subr.mxu0 0.0
    %788 = vmatpush1.xpose.msra.mxu0 0.0
    %789 = vmatprep.subr.mxu0 0.0
    %790 = vmatpush1.xpose.msra.mxu0 0.0
    %791 = vmatprep.subr.mxu0 0.0
    %792 = vmatpush1.xpose.msra.mxu0 0.0
    %793 = vmatprep.subr.mxu0 0.0
    %794 = vmatpush1.xpose.msra.mxu0 0.0
    %795 = vmatprep.subr.mxu0 0.0
    %796 = vmatpush1.xpose.msra.mxu0 0.0
    %797 = vmatprep.subr.mxu0 0.0
    %798 = vmatpush1.xpose.msra.mxu0 0.0
    %799 = vmatprep.subr.mxu0 0.0
    %800 = vmatpush1.xpose.msra.mxu0 %v767
    %801 = vmatprep.subr.mxu0 0.0
    %802 = vmatpush2.xpose.msra.mxu0 0.0
    %803 = vmatprep.subr.mxu0 0.0
    %804 = vmatpush2.xpose.msra.mxu0 0.0
    %805 = vmatprep.subr.mxu0 0.0
    %806 = vmatpush2.xpose.msra.mxu0 0.0
    %807 = vmatprep.subr.mxu0 0.0
    %808 = vmatpush2.xpose.msra.mxu0 0.0
    %809 = vmatprep.subr.mxu0 0.0
    %810 = vmatpush2.xpose.msra.mxu0 0.0
    %811 = vmatprep.subr.mxu0 0.0
    %812 = vmatpush2.xpose.msra.mxu0 0.0
    %813 = vmatprep.subr.mxu0 0.0
    %814 = vmatpush2.xpose.msra.mxu0 0.0
    %815 = vmatprep.subr.mxu0 0.0
    %816 = vmatpush2.xpose.msra.mxu0 0.0
    %817 = vmatprep.subr.mxu0 0.0
    %818 = vmatpush2.xpose.msra.mxu0 0.0
    %819 = vmatprep.subr.mxu0 0.0
    %820 = vmatpush2.xpose.msra.mxu0 0.0
    %821 = vmatprep.subr.mxu0 0.0
    %822 = vmatpush2.xpose.msra.mxu0 0.0
    %823 = vmatprep.subr.mxu0 0.0
    %824 = vmatpush2.xpose.msra.mxu0 0.0
    %825 = vmatprep.subr.mxu0 0.0
    %826 = vmatpush2.xpose.msra.mxu0 0.0
    %827 = vmatprep.subr.mxu0 0.0
    %828 = vmatpush2.xpose.msra.mxu0 0.0
    %829 = vmatprep.subr.mxu0 0.0
    %830 = vmatpush2.xpose.msra.mxu0 0.0
    %831 = vmatprep.subr.mxu0 0.0
    %832 = vmatpush2.xpose.msra.mxu0 0.0
    %833 = vmatprep.mubr.f32.mxu0 0.0
    %834 = vmatmul.mubr.f32.gmra.mxu0 %v765
    %v835 = vpop.f32.mrf.mxu0
    %v836 = vadd.f32 0.0, %v835
    %v837 = vpop.f32.mrf.mxu0
    %838 = vdwg.mxu0
    %v839 = vsel %vm514, %v758, -inf
    %840 = vmax.xlane.f32.xlu0 %v839
    %v841 = vpop.xlane.xlu0 %840
    %v842 = vsel %vm514, %v836, -inf
    %843 = vmax.xlane.f32.xlu0 %v842
    %v844 = vpop.xlane.xlu0 %843
    %v845 = vsub.f32 %v758, %v841
    %v846 = vsub.f32 %v836, %v844
    %v847 = vmul.f32 %v845, 1.442695
    %v848 = vpow.pop %v847
    %v849 = vmul.f32 %v846, 1.442695
    %v850 = vpow.pop %v849
    %v851 = vsel %vm514, %v848, 0.0
    %852 = vadd.xlane.f32.xlu0 %v851
    %v853 = vpop.xlane.xlu0 %852
    %v854 = vsel %vm514, %v850, 0.0
    %855 = vadd.xlane.f32.xlu0 %v854
    %v856 = vpop.xlane.xlu0 %855
    %v857 = vrcp.pop %v853
    %v858 = vmul.f32 %v848, %v857
    %v859 = vrcp.pop %v856
    %v860 = vmul.f32 %v850, %v859
    %862 = vrot.lane.b32.xlu0 %v345, 112
    %v863 = vpop.permute.xlu0 %862
    %v866 = vsel %vm514, %v858, 0
    %868 = vmatprep.subr.mxu0 0.0
    %869 = vmatpush1.msra.mxu0 0.0
    %870 = vmatprep.subr.mxu0 0.0
    %871 = vmatpush1.msra.mxu0 0.0
    %872 = vmatprep.subr.mxu0 0.0
    %873 = vmatpush1.msra.mxu0 0.0
    %874 = vmatprep.subr.mxu0 0.0
    %875 = vmatpush1.msra.mxu0 0.0
    %876 = vmatprep.subr.mxu0 0.0
    %877 = vmatpush1.msra.mxu0 0.0
    %878 = vmatprep.subr.mxu0 0.0
    %879 = vmatpush1.msra.mxu0 0.0
    %880 = vmatprep.subr.mxu0 0.0
    %881 = vmatpush1.msra.mxu0 0.0
    %882 = vmatprep.subr.mxu0 0.0
    %883 = vmatpush1.msra.mxu0 0.0
    %884 = vmatprep.subr.mxu0 0.0
    %885 = vmatpush1.msra.mxu0 0.0
    %886 = vmatprep.subr.mxu0 0.0
    %887 = vmatpush1.msra.mxu0 0.0
    %888 = vmatprep.subr.mxu0 0.0
    %889 = vmatpush1.msra.mxu0 0.0
    %890 = vmatprep.subr.mxu0 0.0
    %891 = vmatpush1.msra.mxu0 0.0
    %892 = vmatprep.subr.mxu0 0.0
    %893 = vmatpush1.msra.mxu0 0.0
    %894 = vmatprep.subr.mxu0 0.0
    %895 = vmatpush1.msra.mxu0 0.0
    %896 = vmatprep.subr.mxu0 0.0
    %897 = vmatpush1.msra.mxu0 0.0
    %898 = vmatprep.subr.mxu0 0.0
    %899 = vmatpush1.msra.mxu0 %v863
    %900 = vmatprep.subr.mxu0 0.0
    %901 = vmatpush2.msra.mxu0 0.0
    %902 = vmatprep.subr.mxu0 0.0
    %903 = vmatpush2.msra.mxu0 0.0
    %904 = vmatprep.subr.mxu0 0.0
    %905 = vmatpush2.msra.mxu0 0.0
    %906 = vmatprep.subr.mxu0 0.0
    %907 = vmatpush2.msra.mxu0 0.0
    %908 = vmatprep.subr.mxu0 0.0
    %909 = vmatpush2.msra.mxu0 0.0
    %910 = vmatprep.subr.mxu0 0.0
    %911 = vmatpush2.msra.mxu0 0.0
    %912 = vmatprep.subr.mxu0 0.0
    %913 = vmatpush2.msra.mxu0 0.0
    %914 = vmatprep.subr.mxu0 0.0
    %915 = vmatpush2.msra.mxu0 0.0
    %916 = vmatprep.subr.mxu0 0.0
    %917 = vmatpush2.msra.mxu0 0.0
    %918 = vmatprep.subr.mxu0 0.0
    %919 = vmatpush2.msra.mxu0 0.0
    %920 = vmatprep.subr.mxu0 0.0
    %921 = vmatpush2.msra.mxu0 0.0
    %922 = vmatprep.subr.mxu0 0.0
    %923 = vmatpush2.msra.mxu0 0.0
    %924 = vmatprep.subr.mxu0 0.0
    %925 = vmatpush2.msra.mxu0 0.0
    %926 = vmatprep.subr.mxu0 0.0
    %927 = vmatpush2.msra.mxu0 0.0
    %928 = vmatprep.subr.mxu0 0.0
    %929 = vmatpush2.msra.mxu0 0.0
    %930 = vmatprep.subr.mxu0 0.0
    %931 = vmatpush2.msra.mxu0 0.0
    %932 = vmatprep.mubr.f32.mxu0 0.0
    %933 = vmatmul.mubr.f32.gmra.mxu0 %v866
    %v934 = vpop.f32.mrf.mxu0
    %v935 = vadd.f32 0.0, %v934
    %v936 = vpop.f32.mrf.mxu0
    %937 = vdwg.mxu0
    %939 = vrot.lane.b32.xlu0 %v350, 112
    %v940 = vpop.permute.xlu0 %939
    %v943 = vsel %vm514, %v860, 0
    %945 = vmatprep.subr.mxu0 0.0
    %946 = vmatpush1.msra.mxu0 0.0
    %947 = vmatprep.subr.mxu0 0.0
    %948 = vmatpush1.msra.mxu0 0.0
    %949 = vmatprep.subr.mxu0 0.0
    %950 = vmatpush1.msra.mxu0 0.0
    %951 = vmatprep.subr.mxu0 0.0
    %952 = vmatpush1.msra.mxu0 0.0
    %953 = vmatprep.subr.mxu0 0.0
    %954 = vmatpush1.msra.mxu0 0.0
    %955 = vmatprep.subr.mxu0 0.0
    %956 = vmatpush1.msra.mxu0 0.0
    %957 = vmatprep.subr.mxu0 0.0
    %958 = vmatpush1.msra.mxu0 0.0
    %959 = vmatprep.subr.mxu0 0.0
    %960 = vmatpush1.msra.mxu0 0.0
    %961 = vmatprep.subr.mxu0 0.0
    %962 = vmatpush1.msra.mxu0 0.0
    %963 = vmatprep.subr.mxu0 0.0
    %964 = vmatpush1.msra.mxu0 0.0
    %965 = vmatprep.subr.mxu0 0.0
    %966 = vmatpush1.msra.mxu0 0.0
    %967 = vmatprep.subr.mxu0 0.0
    %968 = vmatpush1.msra.mxu0 0.0
    %969 = vmatprep.subr.mxu0 0.0
    %970 = vmatpush1.msra.mxu0 0.0
    %971 = vmatprep.subr.mxu0 0.0
    %972 = vmatpush1.msra.mxu0 0.0
    %973 = vmatprep.subr.mxu0 0.0
    %974 = vmatpush1.msra.mxu0 0.0
    %975 = vmatprep.subr.mxu0 0.0
    %976 = vmatpush1.msra.mxu0 %v940
    %977 = vmatprep.subr.mxu0 0.0
    %978 = vmatpush2.msra.mxu0 0.0
    %979 = vmatprep.subr.mxu0 0.0
    %980 = vmatpush2.msra.mxu0 0.0
    %981 = vmatprep.subr.mxu0 0.0
    %982 = vmatpush2.msra.mxu0 0.0
    %983 = vmatprep.subr.mxu0 0.0
    %984 = vmatpush2.msra.mxu0 0.0
    %985 = vmatprep.subr.mxu0 0.0
    %986 = vmatpush2.msra.mxu0 0.0
    %987 = vmatprep.subr.mxu0 0.0
    %988 = vmatpush2.msra.mxu0 0.0
    %989 = vmatprep.subr.mxu0 0.0
    %990 = vmatpush2.msra.mxu0 0.0
    %991 = vmatprep.subr.mxu0 0.0
    %992 = vmatpush2.msra.mxu0 0.0
    %993 = vmatprep.subr.mxu0 0.0
    %994 = vmatpush2.msra.mxu0 0.0
    %995 = vmatprep.subr.mxu0 0.0
    %996 = vmatpush2.msra.mxu0 0.0
    %997 = vmatprep.subr.mxu0 0.0
    %998 = vmatpush2.msra.mxu0 0.0
    %999 = vmatprep.subr.mxu0 0.0
    %1000 = vmatpush2.msra.mxu0 0.0
    %1001 = vmatprep.subr.mxu0 0.0
    %1002 = vmatpush2.msra.mxu0 0.0
    %1003 = vmatprep.subr.mxu0 0.0
    %1004 = vmatpush2.msra.mxu0 0.0
    %1005 = vmatprep.subr.mxu0 0.0
    %1006 = vmatpush2.msra.mxu0 0.0
    %1007 = vmatprep.subr.mxu0 0.0
    %1008 = vmatpush2.msra.mxu0 0.0
    %1009 = vmatprep.mubr.f32.mxu0 0.0
    %1010 = vmatmul.mubr.f32.gmra.mxu0 %v943
    %v1011 = vpop.f32.mrf.mxu0
    %v1012 = vadd.f32 0.0, %v1011
    %v1013 = vpop.f32.mrf.mxu0
    %1014 = vdwg.mxu0
    %v1016 = vsel %vm361, %v935, 0
    %v1019 = vsel %vm361, %v1012, 0
    %1021 = vmatprep.subr.mxu0 0.0
    %1022 = vmatpush1.msra.mxu0 0.0
    %1023 = vmatprep.subr.mxu0 0.0
    %1024 = vmatpush1.msra.mxu0 0.0
    %1025 = vmatprep.subr.mxu0 0.0
    %1026 = vmatpush1.msra.mxu0 0.0
    %1027 = vmatprep.subr.mxu0 0.0
    %1028 = vmatpush1.msra.mxu0 0.0
    %1029 = vmatprep.subr.mxu0 0.0
    %1030 = vmatpush1.msra.mxu0 0.0
    %1031 = vmatprep.subr.mxu0 0.0
    %1032 = vmatpush1.msra.mxu0 0.0
    %1033 = vmatprep.subr.mxu0 0.0
    %1034 = vmatpush1.msra.mxu0 0.0
    %1035 = vmatprep.subr.mxu0 0.0
    %1036 = vmatpush1.msra.mxu0 0.0
    %1037 = vmatprep.subr.mxu0 0.0
    %1038 = vmatpush1.msra.mxu0 0.0
    %1039 = vmatprep.subr.mxu0 0.0
    %1040 = vmatpush1.msra.mxu0 0.0
    %1041 = vmatprep.subr.mxu0 0.0
    %1042 = vmatpush1.msra.mxu0 0.0
    %1043 = vmatprep.subr.mxu0 0.0
    %1044 = vmatpush1.msra.mxu0 0.0
    %1045 = vmatprep.subr.mxu0 0.0
    %1046 = vmatpush1.msra.mxu0 0.0
    %1047 = vmatprep.subr.mxu0 0.0
    %1048 = vmatpush1.msra.mxu0 0.0
    %1049 = vmatprep.subr.mxu0 0.0
    %1050 = vmatpush1.msra.mxu0 %v356
    %1051 = vmatprep.subr.mxu0 0.0
    %1052 = vmatpush1.msra.mxu0 %v355
    %1053 = vmatprep.subr.mxu0 0.0
    %1054 = vmatpush2.msra.mxu0 0.0
    %1055 = vmatprep.subr.mxu0 0.0
    %1056 = vmatpush2.msra.mxu0 0.0
    %1057 = vmatprep.subr.mxu0 0.0
    %1058 = vmatpush2.msra.mxu0 0.0
    %1059 = vmatprep.subr.mxu0 0.0
    %1060 = vmatpush2.msra.mxu0 0.0
    %1061 = vmatprep.subr.mxu0 0.0
    %1062 = vmatpush2.msra.mxu0 0.0
    %1063 = vmatprep.subr.mxu0 0.0
    %1064 = vmatpush2.msra.mxu0 0.0
    %1065 = vmatprep.subr.mxu0 0.0
    %1066 = vmatpush2.msra.mxu0 0.0
    %1067 = vmatprep.subr.mxu0 0.0
    %1068 = vmatpush2.msra.mxu0 0.0
    %1069 = vmatprep.subr.mxu0 0.0
    %1070 = vmatpush2.msra.mxu0 0.0
    %1071 = vmatprep.subr.mxu0 0.0
    %1072 = vmatpush2.msra.mxu0 0.0
    %1073 = vmatprep.subr.mxu0 0.0
    %1074 = vmatpush2.msra.mxu0 0.0
    %1075 = vmatprep.subr.mxu0 0.0
    %1076 = vmatpush2.msra.mxu0 0.0
    %1077 = vmatprep.subr.mxu0 0.0
    %1078 = vmatpush2.msra.mxu0 0.0
    %1079 = vmatprep.subr.mxu0 0.0
    %1080 = vmatpush2.msra.mxu0 0.0
    %1081 = vmatprep.subr.mxu0 0.0
    %1082 = vmatpush2.msra.mxu0 0.0
    %1083 = vmatprep.subr.mxu0 0.0
    %1084 = vmatpush2.msra.mxu0 0.0
    %1085 = vmatprep.mubr.f32.mxu0 0.0
    %1086 = vmatmul.mubr.f32.gmra.mxu0 %v1016
    %v1087 = vpop.f32.mrf.mxu0
    %v1088 = vadd.f32 0.0, %v1087
    %v1089 = vpop.f32.mrf.mxu0
    %1090 = vmatprep.mubr.f32.mxu0 0.0
    %1091 = vmatmul.mubr.f32.gmra.mxu0 %v1019
    %v1092 = vpop.f32.mrf.mxu0
    %v1093 = vadd.f32 0.0, %v1092
    %v1094 = vpop.f32.mrf.mxu0
    %1095 = vdwg.mxu0
    %v1097 = vsel %vm361, %v607, 0
    %v1100 = vsel %vm361, %v680, 0
    %1102 = vmatprep.subr.mxu0 0.0
    %1103 = vmatpush1.msra.mxu0 0.0
    %1104 = vmatprep.subr.mxu0 0.0
    %1105 = vmatpush1.msra.mxu0 0.0
    %1106 = vmatprep.subr.mxu0 0.0
    %1107 = vmatpush1.msra.mxu0 0.0
    %1108 = vmatprep.subr.mxu0 0.0
    %1109 = vmatpush1.msra.mxu0 0.0
    %1110 = vmatprep.subr.mxu0 0.0
    %1111 = vmatpush1.msra.mxu0 0.0
    %1112 = vmatprep.subr.mxu0 0.0
    %1113 = vmatpush1.msra.mxu0 0.0
    %1114 = vmatprep.subr.mxu0 0.0
    %1115 = vmatpush1.msra.mxu0 0.0
    %1116 = vmatprep.subr.mxu0 0.0
    %1117 = vmatpush1.msra.mxu0 0.0
    %1118 = vmatprep.subr.mxu0 0.0
    %1119 = vmatpush1.msra.mxu0 0.0
    %1120 = vmatprep.subr.mxu0 0.0
    %1121 = vmatpush1.msra.mxu0 0.0
    %1122 = vmatprep.subr.mxu0 0.0
    %1123 = vmatpush1.msra.mxu0 0.0
    %1124 = vmatprep.subr.mxu0 0.0
    %1125 = vmatpush1.msra.mxu0 0.0
    %1126 = vmatprep.subr.mxu0 0.0
    %1127 = vmatpush1.msra.mxu0 0.0
    %1128 = vmatprep.subr.mxu0 0.0
    %1129 = vmatpush1.msra.mxu0 0.0
    %1130 = vmatprep.subr.mxu0 0.0
    %1131 = vmatpush1.msra.mxu0 %v354
    %1132 = vmatprep.subr.mxu0 0.0
    %1133 = vmatpush1.msra.mxu0 %v353
    %1134 = vmatprep.subr.mxu0 0.0
    %1135 = vmatpush2.msra.mxu0 0.0
    %1136 = vmatprep.subr.mxu0 0.0
    %1137 = vmatpush2.msra.mxu0 0.0
    %1138 = vmatprep.subr.mxu0 0.0
    %1139 = vmatpush2.msra.mxu0 0.0
    %1140 = vmatprep.subr.mxu0 0.0
    %1141 = vmatpush2.msra.mxu0 0.0
    %1142 = vmatprep.subr.mxu0 0.0
    %1143 = vmatpush2.msra.mxu0 0.0
    %1144 = vmatprep.subr.mxu0 0.0
    %1145 = vmatpush2.msra.mxu0 0.0
    %1146 = vmatprep.subr.mxu0 0.0
    %1147 = vmatpush2.msra.mxu0 0.0
    %1148 = vmatprep.subr.mxu0 0.0
    %1149 = vmatpush2.msra.mxu0 0.0
    %1150 = vmatprep.subr.mxu0 0.0
    %1151 = vmatpush2.msra.mxu0 0.0
    %1152 = vmatprep.subr.mxu0 0.0
    %1153 = vmatpush2.msra.mxu0 0.0
    %1154 = vmatprep.subr.mxu0 0.0
    %1155 = vmatpush2.msra.mxu0 0.0
    %1156 = vmatprep.subr.mxu0 0.0
    %1157 = vmatpush2.msra.mxu0 0.0
    %1158 = vmatprep.subr.mxu0 0.0
    %1159 = vmatpush2.msra.mxu0 0.0
    %1160 = vmatprep.subr.mxu0 0.0
    %1161 = vmatpush2.msra.mxu0 0.0
    %1162 = vmatprep.subr.mxu0 0.0
    %1163 = vmatpush2.msra.mxu0 0.0
    %1164 = vmatprep.subr.mxu0 0.0
    %1165 = vmatpush2.msra.mxu0 0.0
    %1166 = vmatprep.mubr.f32.mxu0 0.0
    %1167 = vmatmul.mubr.f32.gmra.mxu0 %v1097
    %v1168 = vpop.f32.mrf.mxu0
    %v1169 = vadd.f32 %v1088, %v1168
    %v1170 = vpop.f32.mrf.mxu0
    %1171 = vmatprep.mubr.f32.mxu0 0.0
    %1172 = vmatmul.mubr.f32.gmra.mxu0 %v1100
    %v1173 = vpop.f32.mrf.mxu0
    %v1174 = vadd.f32 %v1093, %v1173
    %v1175 = vpop.f32.mrf.mxu0
    %1176 = vdwg.mxu0
    %1177 = vrot.lane.b32.xlu0 %v164, 96
    %v1178 = vpop.permute.xlu0 %1177
    %1179 = vrot.lane.b32.xlu0 %v251, 96
    %v1180 = vpop.permute.xlu0 %1179
    %v1181 = vsel %vm361, %v1178, 0
    %v1183 = vsel %vm361, %v1180, 0
    %1185 = vmatprep.subr.mxu0 0.0
    %1186 = vmatpush1.xpose.msra.mxu0 0.0
    %1187 = vmatprep.subr.mxu0 0.0
    %1188 = vmatpush1.xpose.msra.mxu0 0.0
    %1189 = vmatprep.subr.mxu0 0.0
    %1190 = vmatpush1.xpose.msra.mxu0 0.0
    %1191 = vmatprep.subr.mxu0 0.0
    %1192 = vmatpush1.xpose.msra.mxu0 0.0
    %1193 = vmatprep.subr.mxu0 0.0
    %1194 = vmatpush1.xpose.msra.mxu0 0.0
    %1195 = vmatprep.subr.mxu0 0.0
    %1196 = vmatpush1.xpose.msra.mxu0 0.0
    %1197 = vmatprep.subr.mxu0 0.0
    %1198 = vmatpush1.xpose.msra.mxu0 0.0
    %1199 = vmatprep.subr.mxu0 0.0
    %1200 = vmatpush1.xpose.msra.mxu0 0.0
    %1201 = vmatprep.subr.mxu0 0.0
    %1202 = vmatpush1.xpose.msra.mxu0 0.0
    %1203 = vmatprep.subr.mxu0 0.0
    %1204 = vmatpush1.xpose.msra.mxu0 0.0
    %1205 = vmatprep.subr.mxu0 0.0
    %1206 = vmatpush1.xpose.msra.mxu0 0.0
    %1207 = vmatprep.subr.mxu0 0.0
    %1208 = vmatpush1.xpose.msra.mxu0 0.0
    %1209 = vmatprep.subr.mxu0 0.0
    %1210 = vmatpush1.xpose.msra.mxu0 0.0
    %1211 = vmatprep.subr.mxu0 0.0
    %1212 = vmatpush1.xpose.msra.mxu0 0.0
    %1213 = vmatprep.subr.mxu0 0.0
    %1214 = vmatpush1.xpose.msra.mxu0 0.0
    %1215 = vmatprep.subr.mxu0 0.0
    %1216 = vmatpush1.xpose.msra.mxu0 %v1183
    %1217 = vmatprep.subr.mxu0 0.0
    %1218 = vmatpush2.xpose.msra.mxu0 0.0
    %1219 = vmatprep.subr.mxu0 0.0
    %1220 = vmatpush2.xpose.msra.mxu0 0.0
    %1221 = vmatprep.subr.mxu0 0.0
    %1222 = vmatpush2.xpose.msra.mxu0 0.0
    %1223 = vmatprep.subr.mxu0 0.0
    %1224 = vmatpush2.xpose.msra.mxu0 0.0
    %1225 = vmatprep.subr.mxu0 0.0
    %1226 = vmatpush2.xpose.msra.mxu0 0.0
    %1227 = vmatprep.subr.mxu0 0.0
    %1228 = vmatpush2.xpose.msra.mxu0 0.0
    %1229 = vmatprep.subr.mxu0 0.0
    %1230 = vmatpush2.xpose.msra.mxu0 0.0
    %1231 = vmatprep.subr.mxu0 0.0
    %1232 = vmatpush2.xpose.msra.mxu0 0.0
    %1233 = vmatprep.subr.mxu0 0.0
    %1234 = vmatpush2.xpose.msra.mxu0 0.0
    %1235 = vmatprep.subr.mxu0 0.0
    %1236 = vmatpush2.xpose.msra.mxu0 0.0
    %1237 = vmatprep.subr.mxu0 0.0
    %1238 = vmatpush2.xpose.msra.mxu0 0.0
    %1239 = vmatprep.subr.mxu0 0.0
    %1240 = vmatpush2.xpose.msra.mxu0 0.0
    %1241 = vmatprep.subr.mxu0 0.0
    %1242 = vmatpush2.xpose.msra.mxu0 0.0
    %1243 = vmatprep.subr.mxu0 0.0
    %1244 = vmatpush2.xpose.msra.mxu0 0.0
    %1245 = vmatprep.subr.mxu0 0.0
    %1246 = vmatpush2.xpose.msra.mxu0 0.0
    %1247 = vmatprep.subr.mxu0 0.0
    %1248 = vmatpush2.xpose.msra.mxu0 0.0
    %1249 = vmatprep.mubr.f32.mxu0 0.0
    %1250 = vmatmul.mubr.f32.gmra.mxu0 %v1181
    %v1251 = vpop.f32.mrf.mxu0
    %v1252 = vadd.f32 0.0, %v1251
    %v1253 = vpop.f32.mrf.mxu0
    %1254 = vdwg.mxu0
    %1255 = vrot.lane.b32.xlu0 %v169, 96
    %v1256 = vpop.permute.xlu0 %1255
    %1257 = vrot.lane.b32.xlu0 %v256, 96
    %v1258 = vpop.permute.xlu0 %1257
    %v1259 = vsel %vm361, %v1256, 0
    %v1261 = vsel %vm361, %v1258, 0
    %1263 = vmatprep.subr.mxu0 0.0
    %1264 = vmatpush1.xpose.msra.mxu0 0.0
    %1265 = vmatprep.subr.mxu0 0.0
    %1266 = vmatpush1.xpose.msra.mxu0 0.0
    %1267 = vmatprep.subr.mxu0 0.0
    %1268 = vmatpush1.xpose.msra.mxu0 0.0
    %1269 = vmatprep.subr.mxu0 0.0
    %1270 = vmatpush1.xpose.msra.mxu0 0.0
    %1271 = vmatprep.subr.mxu0 0.0
    %1272 = vmatpush1.xpose.msra.mxu0 0.0
    %1273 = vmatprep.subr.mxu0 0.0
    %1274 = vmatpush1.xpose.msra.mxu0 0.0
    %1275 = vmatprep.subr.mxu0 0.0
    %1276 = vmatpush1.xpose.msra.mxu0 0.0
    %1277 = vmatprep.subr.mxu0 0.0
    %1278 = vmatpush1.xpose.msra.mxu0 0.0
    %1279 = vmatprep.subr.mxu0 0.0
    %1280 = vmatpush1.xpose.msra.mxu0 0.0
    %1281 = vmatprep.subr.mxu0 0.0
    %1282 = vmatpush1.xpose.msra.mxu0 0.0
    %1283 = vmatprep.subr.mxu0 0.0
    %1284 = vmatpush1.xpose.msra.mxu0 0.0
    %1285 = vmatprep.subr.mxu0 0.0
    %1286 = vmatpush1.xpose.msra.mxu0 0.0
    %1287 = vmatprep.subr.mxu0 0.0
    %1288 = vmatpush1.xpose.msra.mxu0 0.0
    %1289 = vmatprep.subr.mxu0 0.0
    %1290 = vmatpush1.xpose.msra.mxu0 0.0
    %1291 = vmatprep.subr.mxu0 0.0
    %1292 = vmatpush1.xpose.msra.mxu0 0.0
    %1293 = vmatprep.subr.mxu0 0.0
    %1294 = vmatpush1.xpose.msra.mxu0 %v1261
    %1295 = vmatprep.subr.mxu0 0.0
    %1296 = vmatpush2.xpose.msra.mxu0 0.0
    %1297 = vmatprep.subr.mxu0 0.0
    %1298 = vmatpush2.xpose.msra.mxu0 0.0
    %1299 = vmatprep.subr.mxu0 0.0
    %1300 = vmatpush2.xpose.msra.mxu0 0.0
    %1301 = vmatprep.subr.mxu0 0.0
    %1302 = vmatpush2.xpose.msra.mxu0 0.0
    %1303 = vmatprep.subr.mxu0 0.0
    %1304 = vmatpush2.xpose.msra.mxu0 0.0
    %1305 = vmatprep.subr.mxu0 0.0
    %1306 = vmatpush2.xpose.msra.mxu0 0.0
    %1307 = vmatprep.subr.mxu0 0.0
    %1308 = vmatpush2.xpose.msra.mxu0 0.0
    %1309 = vmatprep.subr.mxu0 0.0
    %1310 = vmatpush2.xpose.msra.mxu0 0.0
    %1311 = vmatprep.subr.mxu0 0.0
    %1312 = vmatpush2.xpose.msra.mxu0 0.0
    %1313 = vmatprep.subr.mxu0 0.0
    %1314 = vmatpush2.xpose.msra.mxu0 0.0
    %1315 = vmatprep.subr.mxu0 0.0
    %1316 = vmatpush2.xpose.msra.mxu0 0.0
    %1317 = vmatprep.subr.mxu0 0.0
    %1318 = vmatpush2.xpose.msra.mxu0 0.0
    %1319 = vmatprep.subr.mxu0 0.0
    %1320 = vmatpush2.xpose.msra.mxu0 0.0
    %1321 = vmatprep.subr.mxu0 0.0
    %1322 = vmatpush2.xpose.msra.mxu0 0.0
    %1323 = vmatprep.subr.mxu0 0.0
    %1324 = vmatpush2.xpose.msra.mxu0 0.0
    %1325 = vmatprep.subr.mxu0 0.0
    %1326 = vmatpush2.xpose.msra.mxu0 0.0
    %1327 = vmatprep.mubr.f32.mxu0 0.0
    %1328 = vmatmul.mubr.f32.gmra.mxu0 %v1259
    %v1329 = vpop.f32.mrf.mxu0
    %v1330 = vadd.f32 0.0, %v1329
    %v1331 = vpop.f32.mrf.mxu0
    %1332 = vdwg.mxu0
    %v1333 = vsel %vm514, %v1252, -inf
    %1334 = vmax.xlane.f32.xlu0 %v1333
    %v1335 = vpop.xlane.xlu0 %1334
    %v1336 = vsel %vm514, %v1330, -inf
    %1337 = vmax.xlane.f32.xlu0 %v1336
    %v1338 = vpop.xlane.xlu0 %1337
    %v1339 = vsub.f32 %v1252, %v1335
    %v1340 = vsub.f32 %v1330, %v1338
    %v1341 = vmul.f32 %v1339, 1.442695
    %v1342 = vpow.pop %v1341
    %v1343 = vmul.f32 %v1340, 1.442695
    %v1344 = vpow.pop %v1343
    %v1345 = vsel %vm514, %v1342, 0.0
    %1346 = vadd.xlane.f32.xlu0 %v1345
    %v1347 = vpop.xlane.xlu0 %1346
    %v1348 = vsel %vm514, %v1344, 0.0
    %1349 = vadd.xlane.f32.xlu0 %v1348
    %v1350 = vpop.xlane.xlu0 %1349
    %v1351 = vrcp.pop %v1347
    %v1352 = vmul.f32 %v1342, %v1351
    %v1353 = vrcp.pop %v1350
    %v1354 = vmul.f32 %v1344, %v1353
    %1355 = vrot.lane.b32.xlu0 %v345, 96
    %v1356 = vpop.permute.xlu0 %1355
    %v1359 = vsel %vm514, %v1352, 0
    %1361 = vmatprep.subr.mxu0 0.0
    %1362 = vmatpush1.msra.mxu0 0.0
    %1363 = vmatprep.subr.mxu0 0.0
    %1364 = vmatpush1.msra.mxu0 0.0
    %1365 = vmatprep.subr.mxu0 0.0
    %1366 = vmatpush1.msra.mxu0 0.0
    %1367 = vmatprep.subr.mxu0 0.0
    %1368 = vmatpush1.msra.mxu0 0.0
    %1369 = vmatprep.subr.mxu0 0.0
    %1370 = vmatpush1.msra.mxu0 0.0
    %1371 = vmatprep.subr.mxu0 0.0
    %1372 = vmatpush1.msra.mxu0 0.0
    %1373 = vmatprep.subr.mxu0 0.0
    %1374 = vmatpush1.msra.mxu0 0.0
    %1375 = vmatprep.subr.mxu0 0.0
    %1376 = vmatpush1.msra.mxu0 0.0
    %1377 = vmatprep.subr.mxu0 0.0
    %1378 = vmatpush1.msra.mxu0 0.0
    %1379 = vmatprep.subr.mxu0 0.0
    %1380 = vmatpush1.msra.mxu0 0.0
    %1381 = vmatprep.subr.mxu0 0.0
    %1382 = vmatpush1.msra.mxu0 0.0
    %1383 = vmatprep.subr.mxu0 0.0
    %1384 = vmatpush1.msra.mxu0 0.0
    %1385 = vmatprep.subr.mxu0 0.0
    %1386 = vmatpush1.msra.mxu0 0.0
    %1387 = vmatprep.subr.mxu0 0.0
    %1388 = vmatpush1.msra.mxu0 0.0
    %1389 = vmatprep.subr.mxu0 0.0
    %1390 = vmatpush1.msra.mxu0 0.0
    %1391 = vmatprep.subr.mxu0 0.0
    %1392 = vmatpush1.msra.mxu0 %v1356
    %1393 = vmatprep.subr.mxu0 0.0
    %1394 = vmatpush2.msra.mxu0 0.0
    %1395 = vmatprep.subr.mxu0 0.0
    %1396 = vmatpush2.msra.mxu0 0.0
    %1397 = vmatprep.subr.mxu0 0.0
    %1398 = vmatpush2.msra.mxu0 0.0
    %1399 = vmatprep.subr.mxu0 0.0
    %1400 = vmatpush2.msra.mxu0 0.0
    %1401 = vmatprep.subr.mxu0 0.0
    %1402 = vmatpush2.msra.mxu0 0.0
    %1403 = vmatprep.subr.mxu0 0.0
    %1404 = vmatpush2.msra.mxu0 0.0
    %1405 = vmatprep.subr.mxu0 0.0
    %1406 = vmatpush2.msra.mxu0 0.0
    %1407 = vmatprep.subr.mxu0 0.0
    %1408 = vmatpush2.msra.mxu0 0.0
    %1409 = vmatprep.subr.mxu0 0.0
    %1410 = vmatpush2.msra.mxu0 0.0
    %1411 = vmatprep.subr.mxu0 0.0
    %1412 = vmatpush2.msra.mxu0 0.0
    %1413 = vmatprep.subr.mxu0 0.0
    %1414 = vmatpush2.msra.mxu0 0.0
    %1415 = vmatprep.subr.mxu0 0.0
    %1416 = vmatpush2.msra.mxu0 0.0
    %1417 = vmatprep.subr.mxu0 0.0
    %1418 = vmatpush2.msra.mxu0 0.0
    %1419 = vmatprep.subr.mxu0 0.0
    %1420 = vmatpush2.msra.mxu0 0.0
    %1421 = vmatprep.subr.mxu0 0.0
    %1422 = vmatpush2.msra.mxu0 0.0
    %1423 = vmatprep.subr.mxu0 0.0
    %1424 = vmatpush2.msra.mxu0 0.0
    %1425 = vmatprep.mubr.f32.mxu0 0.0
    %1426 = vmatmul.mubr.f32.gmra.mxu0 %v1359
    %v1427 = vpop.f32.mrf.mxu0
    %v1428 = vadd.f32 0.0, %v1427
    %v1429 = vpop.f32.mrf.mxu0
    %1430 = vdwg.mxu0
    %1431 = vrot.lane.b32.xlu0 %v350, 96
    %v1432 = vpop.permute.xlu0 %1431
    %v1435 = vsel %vm514, %v1354, 0
    %1437 = vmatprep.subr.mxu0 0.0
    %1438 = vmatpush1.msra.mxu0 0.0
    %1439 = vmatprep.subr.mxu0 0.0
    %1440 = vmatpush1.msra.mxu0 0.0
    %1441 = vmatprep.subr.mxu0 0.0
    %1442 = vmatpush1.msra.mxu0 0.0
    %1443 = vmatprep.subr.mxu0 0.0
    %1444 = vmatpush1.msra.mxu0 0.0
    %1445 = vmatprep.subr.mxu0 0.0
    %1446 = vmatpush1.msra.mxu0 0.0
    %1447 = vmatprep.subr.mxu0 0.0
    %1448 = vmatpush1.msra.mxu0 0.0
    %1449 = vmatprep.subr.mxu0 0.0
    %1450 = vmatpush1.msra.mxu0 0.0
    %1451 = vmatprep.subr.mxu0 0.0
    %1452 = vmatpush1.msra.mxu0 0.0
    %1453 = vmatprep.subr.mxu0 0.0
    %1454 = vmatpush1.msra.mxu0 0.0
    %1455 = vmatprep.subr.mxu0 0.0
    %1456 = vmatpush1.msra.mxu0 0.0
    %1457 = vmatprep.subr.mxu0 0.0
    %1458 = vmatpush1.msra.mxu0 0.0
    %1459 = vmatprep.subr.mxu0 0.0
    %1460 = vmatpush1.msra.mxu0 0.0
    %1461 = vmatprep.subr.mxu0 0.0
    %1462 = vmatpush1.msra.mxu0 0.0
    %1463 = vmatprep.subr.mxu0 0.0
    %1464 = vmatpush1.msra.mxu0 0.0
    %1465 = vmatprep.subr.mxu0 0.0
    %1466 = vmatpush1.msra.mxu0 0.0
    %1467 = vmatprep.subr.mxu0 0.0
    %1468 = vmatpush1.msra.mxu0 %v1432
    %1469 = vmatprep.subr.mxu0 0.0
    %1470 = vmatpush2.msra.mxu0 0.0
    %1471 = vmatprep.subr.mxu0 0.0
    %1472 = vmatpush2.msra.mxu0 0.0
    %1473 = vmatprep.subr.mxu0 0.0
    %1474 = vmatpush2.msra.mxu0 0.0
    %1475 = vmatprep.subr.mxu0 0.0
    %1476 = vmatpush2.msra.mxu0 0.0
    %1477 = vmatprep.subr.mxu0 0.0
    %1478 = vmatpush2.msra.mxu0 0.0
    %1479 = vmatprep.subr.mxu0 0.0
    %1480 = vmatpush2.msra.mxu0 0.0
    %1481 = vmatprep.subr.mxu0 0.0
    %1482 = vmatpush2.msra.mxu0 0.0
    %1483 = vmatprep.subr.mxu0 0.0
    %1484 = vmatpush2.msra.mxu0 0.0
    %1485 = vmatprep.subr.mxu0 0.0
    %1486 = vmatpush2.msra.mxu0 0.0
    %1487 = vmatprep.subr.mxu0 0.0
    %1488 = vmatpush2.msra.mxu0 0.0
    %1489 = vmatprep.subr.mxu0 0.0
    %1490 = vmatpush2.msra.mxu0 0.0
    %1491 = vmatprep.subr.mxu0 0.0
    %1492 = vmatpush2.msra.mxu0 0.0
    %1493 = vmatprep.subr.mxu0 0.0
    %1494 = vmatpush2.msra.mxu0 0.0
    %1495 = vmatprep.subr.mxu0 0.0
    %1496 = vmatpush2.msra.mxu0 0.0
    %1497 = vmatprep.subr.mxu0 0.0
    %1498 = vmatpush2.msra.mxu0 0.0
    %1499 = vmatprep.subr.mxu0 0.0
    %1500 = vmatpush2.msra.mxu0 0.0
    %1501 = vmatprep.mubr.f32.mxu0 0.0
    %1502 = vmatmul.mubr.f32.gmra.mxu0 %v1435
    %v1503 = vpop.f32.mrf.mxu0
    %v1504 = vadd.f32 0.0, %v1503
    %v1505 = vpop.f32.mrf.mxu0
    %1506 = vdwg.mxu0
    %v1508 = vsel %vm361, %v1428, 0
    %v1511 = vsel %vm361, %v1504, 0
    %1513 = vmatprep.subr.mxu0 0.0
    %1514 = vmatpush1.msra.mxu0 0.0
    %1515 = vmatprep.subr.mxu0 0.0
    %1516 = vmatpush1.msra.mxu0 0.0
    %1517 = vmatprep.subr.mxu0 0.0
    %1518 = vmatpush1.msra.mxu0 0.0
    %1519 = vmatprep.subr.mxu0 0.0
    %1520 = vmatpush1.msra.mxu0 0.0
    %1521 = vmatprep.subr.mxu0 0.0
    %1522 = vmatpush1.msra.mxu0 0.0
    %1523 = vmatprep.subr.mxu0 0.0
    %1524 = vmatpush1.msra.mxu0 0.0
    %1525 = vmatprep.subr.mxu0 0.0
    %1526 = vmatpush1.msra.mxu0 0.0
    %1527 = vmatprep.subr.mxu0 0.0
    %1528 = vmatpush1.msra.mxu0 0.0
    %1529 = vmatprep.subr.mxu0 0.0
    %1530 = vmatpush1.msra.mxu0 0.0
    %1531 = vmatprep.subr.mxu0 0.0
    %1532 = vmatpush1.msra.mxu0 0.0
    %1533 = vmatprep.subr.mxu0 0.0
    %1534 = vmatpush1.msra.mxu0 0.0
    %1535 = vmatprep.subr.mxu0 0.0
    %1536 = vmatpush1.msra.mxu0 0.0
    %1537 = vmatprep.subr.mxu0 0.0
    %1538 = vmatpush1.msra.mxu0 0.0
    %1539 = vmatprep.subr.mxu0 0.0
    %1540 = vmatpush1.msra.mxu0 0.0
    %1541 = vmatprep.subr.mxu0 0.0
    %1542 = vmatpush1.msra.mxu0 %v358
    %1543 = vmatprep.subr.mxu0 0.0
    %1544 = vmatpush1.msra.mxu0 %v357
    %1545 = vmatprep.subr.mxu0 0.0
    %1546 = vmatpush2.msra.mxu0 0.0
    %1547 = vmatprep.subr.mxu0 0.0
    %1548 = vmatpush2.msra.mxu0 0.0
    %1549 = vmatprep.subr.mxu0 0.0
    %1550 = vmatpush2.msra.mxu0 0.0
    %1551 = vmatprep.subr.mxu0 0.0
    %1552 = vmatpush2.msra.mxu0 0.0
    %1553 = vmatprep.subr.mxu0 0.0
    %1554 = vmatpush2.msra.mxu0 0.0
    %1555 = vmatprep.subr.mxu0 0.0
    %1556 = vmatpush2.msra.mxu0 0.0
    %1557 = vmatprep.subr.mxu0 0.0
    %1558 = vmatpush2.msra.mxu0 0.0
    %1559 = vmatprep.subr.mxu0 0.0
    %1560 = vmatpush2.msra.mxu0 0.0
    %1561 = vmatprep.subr.mxu0 0.0
    %1562 = vmatpush2.msra.mxu0 0.0
    %1563 = vmatprep.subr.mxu0 0.0
    %1564 = vmatpush2.msra.mxu0 0.0
    %1565 = vmatprep.subr.mxu0 0.0
    %1566 = vmatpush2.msra.mxu0 0.0
    %1567 = vmatprep.subr.mxu0 0.0
    %1568 = vmatpush2.msra.mxu0 0.0
    %1569 = vmatprep.subr.mxu0 0.0
    %1570 = vmatpush2.msra.mxu0 0.0
    %1571 = vmatprep.subr.mxu0 0.0
    %1572 = vmatpush2.msra.mxu0 0.0
    %1573 = vmatprep.subr.mxu0 0.0
    %1574 = vmatpush2.msra.mxu0 0.0
    %1575 = vmatprep.subr.mxu0 0.0
    %1576 = vmatpush2.msra.mxu0 0.0
    %1577 = vmatprep.mubr.f32.mxu0 0.0
    %1578 = vmatmul.mubr.f32.gmra.mxu0 %v1508
    %v1579 = vpop.f32.mrf.mxu0
    %v1580 = vadd.f32 0.0, %v1579
    %v1581 = vpop.f32.mrf.mxu0
    %1582 = vmatprep.mubr.f32.mxu0 0.0
    %1583 = vmatmul.mubr.f32.gmra.mxu0 %v1511
    %v1584 = vpop.f32.mrf.mxu0
    %v1585 = vadd.f32 0.0, %v1584
    %v1586 = vpop.f32.mrf.mxu0
    %1587 = vdwg.mxu0
    %v1588 = vadd.f32 %v1169, %v1580
    %v1589 = vadd.f32 %v1174, %v1585
    %1590 = vrot.lane.b32.xlu0 %v164, 80
    %v1591 = vpop.permute.xlu0 %1590
    %1592 = vrot.lane.b32.xlu0 %v251, 80
    %v1593 = vpop.permute.xlu0 %1592
    %v1594 = vsel %vm361, %v1591, 0
    %v1596 = vsel %vm361, %v1593, 0
    %1598 = vmatprep.subr.mxu0 0.0
    %1599 = vmatpush1.xpose.msra.mxu0 0.0
    %1600 = vmatprep.subr.mxu0 0.0
    %1601 = vmatpush1.xpose.msra.mxu0 0.0
    %1602 = vmatprep.subr.mxu0 0.0
    %1603 = vmatpush1.xpose.msra.mxu0 0.0
    %1604 = vmatprep.subr.mxu0 0.0
    %1605 = vmatpush1.xpose.msra.mxu0 0.0
    %1606 = vmatprep.subr.mxu0 0.0
    %1607 = vmatpush1.xpose.msra.mxu0 0.0
    %1608 = vmatprep.subr.mxu0 0.0
    %1609 = vmatpush1.xpose.msra.mxu0 0.0
    %1610 = vmatprep.subr.mxu0 0.0
    %1611 = vmatpush1.xpose.msra.mxu0 0.0
    %1612 = vmatprep.subr.mxu0 0.0
    %1613 = vmatpush1.xpose.msra.mxu0 0.0
    %1614 = vmatprep.subr.mxu0 0.0
    %1615 = vmatpush1.xpose.msra.mxu0 0.0
    %1616 = vmatprep.subr.mxu0 0.0
    %1617 = vmatpush1.xpose.msra.mxu0 0.0
    %1618 = vmatprep.subr.mxu0 0.0
    %1619 = vmatpush1.xpose.msra.mxu0 0.0
    %1620 = vmatprep.subr.mxu0 0.0
    %1621 = vmatpush1.xpose.msra.mxu0 0.0
    %1622 = vmatprep.subr.mxu0 0.0
    %1623 = vmatpush1.xpose.msra.mxu0 0.0
    %1624 = vmatprep.subr.mxu0 0.0
    %1625 = vmatpush1.xpose.msra.mxu0 0.0
    %1626 = vmatprep.subr.mxu0 0.0
    %1627 = vmatpush1.xpose.msra.mxu0 0.0
    %1628 = vmatprep.subr.mxu0 0.0
    %1629 = vmatpush1.xpose.msra.mxu0 %v1596
    %1630 = vmatprep.subr.mxu0 0.0
    %1631 = vmatpush2.xpose.msra.mxu0 0.0
    %1632 = vmatprep.subr.mxu0 0.0
    %1633 = vmatpush2.xpose.msra.mxu0 0.0
    %1634 = vmatprep.subr.mxu0 0.0
    %1635 = vmatpush2.xpose.msra.mxu0 0.0
    %1636 = vmatprep.subr.mxu0 0.0
    %1637 = vmatpush2.xpose.msra.mxu0 0.0
    %1638 = vmatprep.subr.mxu0 0.0
    %1639 = vmatpush2.xpose.msra.mxu0 0.0
    %1640 = vmatprep.subr.mxu0 0.0
    %1641 = vmatpush2.xpose.msra.mxu0 0.0
    %1642 = vmatprep.subr.mxu0 0.0
    %1643 = vmatpush2.xpose.msra.mxu0 0.0
    %1644 = vmatprep.subr.mxu0 0.0
    %1645 = vmatpush2.xpose.msra.mxu0 0.0
    %1646 = vmatprep.subr.mxu0 0.0
    %1647 = vmatpush2.xpose.msra.mxu0 0.0
    %1648 = vmatprep.subr.mxu0 0.0
    %1649 = vmatpush2.xpose.msra.mxu0 0.0
    %1650 = vmatprep.subr.mxu0 0.0
    %1651 = vmatpush2.xpose.msra.mxu0 0.0
    %1652 = vmatprep.subr.mxu0 0.0
    %1653 = vmatpush2.xpose.msra.mxu0 0.0
    %1654 = vmatprep.subr.mxu0 0.0
    %1655 = vmatpush2.xpose.msra.mxu0 0.0
    %1656 = vmatprep.subr.mxu0 0.0
    %1657 = vmatpush2.xpose.msra.mxu0 0.0
    %1658 = vmatprep.subr.mxu0 0.0
    %1659 = vmatpush2.xpose.msra.mxu0 0.0
    %1660 = vmatprep.subr.mxu0 0.0
    %1661 = vmatpush2.xpose.msra.mxu0 0.0
    %1662 = vmatprep.mubr.f32.mxu0 0.0
    %1663 = vmatmul.mubr.f32.gmra.mxu0 %v1594
    %v1664 = vpop.f32.mrf.mxu0
    %v1665 = vadd.f32 0.0, %v1664
    %v1666 = vpop.f32.mrf.mxu0
    %1667 = vdwg.mxu0
    %1668 = vrot.lane.b32.xlu0 %v169, 80
    %v1669 = vpop.permute.xlu0 %1668
    %1670 = vrot.lane.b32.xlu0 %v256, 80
    %v1671 = vpop.permute.xlu0 %1670
    %v1672 = vsel %vm361, %v1669, 0
    %v1674 = vsel %vm361, %v1671, 0
    %1676 = vmatprep.subr.mxu0 0.0
    %1677 = vmatpush1.xpose.msra.mxu0 0.0
    %1678 = vmatprep.subr.mxu0 0.0
    %1679 = vmatpush1.xpose.msra.mxu0 0.0
    %1680 = vmatprep.subr.mxu0 0.0
    %1681 = vmatpush1.xpose.msra.mxu0 0.0
    %1682 = vmatprep.subr.mxu0 0.0
    %1683 = vmatpush1.xpose.msra.mxu0 0.0
    %1684 = vmatprep.subr.mxu0 0.0
    %1685 = vmatpush1.xpose.msra.mxu0 0.0
    %1686 = vmatprep.subr.mxu0 0.0
    %1687 = vmatpush1.xpose.msra.mxu0 0.0
    %1688 = vmatprep.subr.mxu0 0.0
    %1689 = vmatpush1.xpose.msra.mxu0 0.0
    %1690 = vmatprep.subr.mxu0 0.0
    %1691 = vmatpush1.xpose.msra.mxu0 0.0
    %1692 = vmatprep.subr.mxu0 0.0
    %1693 = vmatpush1.xpose.msra.mxu0 0.0
    %1694 = vmatprep.subr.mxu0 0.0
    %1695 = vmatpush1.xpose.msra.mxu0 0.0
    %1696 = vmatprep.subr.mxu0 0.0
    %1697 = vmatpush1.xpose.msra.mxu0 0.0
    %1698 = vmatprep.subr.mxu0 0.0
    %1699 = vmatpush1.xpose.msra.mxu0 0.0
    %1700 = vmatprep.subr.mxu0 0.0
    %1701 = vmatpush1.xpose.msra.mxu0 0.0
    %1702 = vmatprep.subr.mxu0 0.0
    %1703 = vmatpush1.xpose.msra.mxu0 0.0
    %1704 = vmatprep.subr.mxu0 0.0
    %1705 = vmatpush1.xpose.msra.mxu0 0.0
    %1706 = vmatprep.subr.mxu0 0.0
    %1707 = vmatpush1.xpose.msra.mxu0 %v1674
    %1708 = vmatprep.subr.mxu0 0.0
    %1709 = vmatpush2.xpose.msra.mxu0 0.0
    %1710 = vmatprep.subr.mxu0 0.0
    %1711 = vmatpush2.xpose.msra.mxu0 0.0
    %1712 = vmatprep.subr.mxu0 0.0
    %1713 = vmatpush2.xpose.msra.mxu0 0.0
    %1714 = vmatprep.subr.mxu0 0.0
    %1715 = vmatpush2.xpose.msra.mxu0 0.0
    %1716 = vmatprep.subr.mxu0 0.0
    %1717 = vmatpush2.xpose.msra.mxu0 0.0
    %1718 = vmatprep.subr.mxu0 0.0
    %1719 = vmatpush2.xpose.msra.mxu0 0.0
    %1720 = vmatprep.subr.mxu0 0.0
    %1721 = vmatpush2.xpose.msra.mxu0 0.0
    %1722 = vmatprep.subr.mxu0 0.0
    %1723 = vmatpush2.xpose.msra.mxu0 0.0
    %1724 = vmatprep.subr.mxu0 0.0
    %1725 = vmatpush2.xpose.msra.mxu0 0.0
    %1726 = vmatprep.subr.mxu0 0.0
    %1727 = vmatpush2.xpose.msra.mxu0 0.0
    %1728 = vmatprep.subr.mxu0 0.0
    %1729 = vmatpush2.xpose.msra.mxu0 0.0
    %1730 = vmatprep.subr.mxu0 0.0
    %1731 = vmatpush2.xpose.msra.mxu0 0.0
    %1732 = vmatprep.subr.mxu0 0.0
    %1733 = vmatpush2.xpose.msra.mxu0 0.0
    %1734 = vmatprep.subr.mxu0 0.0
    %1735 = vmatpush2.xpose.msra.mxu0 0.0
    %1736 = vmatprep.subr.mxu0 0.0
    %1737 = vmatpush2.xpose.msra.mxu0 0.0
    %1738 = vmatprep.subr.mxu0 0.0
    %1739 = vmatpush2.xpose.msra.mxu0 0.0
    %1740 = vmatprep.mubr.f32.mxu0 0.0
    %1741 = vmatmul.mubr.f32.gmra.mxu0 %v1672
    %v1742 = vpop.f32.mrf.mxu0
    %v1743 = vadd.f32 0.0, %v1742
    %v1744 = vpop.f32.mrf.mxu0
    %1745 = vdwg.mxu0
    %v1746 = vsel %vm514, %v1665, -inf
    %1747 = vmax.xlane.f32.xlu0 %v1746
    %v1748 = vpop.xlane.xlu0 %1747
    %v1749 = vsel %vm514, %v1743, -inf
    %1750 = vmax.xlane.f32.xlu0 %v1749
    %v1751 = vpop.xlane.xlu0 %1750
    %v1752 = vsub.f32 %v1665, %v1748
    %v1753 = vsub.f32 %v1743, %v1751
    %v1754 = vmul.f32 %v1752, 1.442695
    %v1755 = vpow.pop %v1754
    %v1756 = vmul.f32 %v1753, 1.442695
    %v1757 = vpow.pop %v1756
    %v1758 = vsel %vm514, %v1755, 0.0
    %1759 = vadd.xlane.f32.xlu0 %v1758
    %v1760 = vpop.xlane.xlu0 %1759
    %v1761 = vsel %vm514, %v1757, 0.0
    %1762 = vadd.xlane.f32.xlu0 %v1761
    %v1763 = vpop.xlane.xlu0 %1762
    %v1764 = vrcp.pop %v1760
    %v1765 = vmul.f32 %v1755, %v1764
    %v1766 = vrcp.pop %v1763
    %v1767 = vmul.f32 %v1757, %v1766
    %1768 = vrot.lane.b32.xlu0 %v345, 80
    %v1769 = vpop.permute.xlu0 %1768
    %v1772 = vsel %vm514, %v1765, 0
    %1774 = vmatprep.subr.mxu0 0.0
    %1775 = vmatpush1.msra.mxu0 0.0
    %1776 = vmatprep.subr.mxu0 0.0
    %1777 = vmatpush1.msra.mxu0 0.0
    %1778 = vmatprep.subr.mxu0 0.0
    %1779 = vmatpush1.msra.mxu0 0.0
    %1780 = vmatprep.subr.mxu0 0.0
    %1781 = vmatpush1.msra.mxu0 0.0
    %1782 = vmatprep.subr.mxu0 0.0
    %1783 = vmatpush1.msra.mxu0 0.0
    %1784 = vmatprep.subr.mxu0 0.0
    %1785 = vmatpush1.msra.mxu0 0.0
    %1786 = vmatprep.subr.mxu0 0.0
    %1787 = vmatpush1.msra.mxu0 0.0
    %1788 = vmatprep.subr.mxu0 0.0
    %1789 = vmatpush1.msra.mxu0 0.0
    %1790 = vmatprep.subr.mxu0 0.0
    %1791 = vmatpush1.msra.mxu0 0.0
    %1792 = vmatprep.subr.mxu0 0.0
    %1793 = vmatpush1.msra.mxu0 0.0
    %1794 = vmatprep.subr.mxu0 0.0
    %1795 = vmatpush1.msra.mxu0 0.0
    %1796 = vmatprep.subr.mxu0 0.0
    %1797 = vmatpush1.msra.mxu0 0.0
    %1798 = vmatprep.subr.mxu0 0.0
    %1799 = vmatpush1.msra.mxu0 0.0
    %1800 = vmatprep.subr.mxu0 0.0
    %1801 = vmatpush1.msra.mxu0 0.0
    %1802 = vmatprep.subr.mxu0 0.0
    %1803 = vmatpush1.msra.mxu0 0.0
    %1804 = vmatprep.subr.mxu0 0.0
    %1805 = vmatpush1.msra.mxu0 %v1769
    %1806 = vmatprep.subr.mxu0 0.0
    %1807 = vmatpush2.msra.mxu0 0.0
    %1808 = vmatprep.subr.mxu0 0.0
    %1809 = vmatpush2.msra.mxu0 0.0
    %1810 = vmatprep.subr.mxu0 0.0
    %1811 = vmatpush2.msra.mxu0 0.0
    %1812 = vmatprep.subr.mxu0 0.0
    %1813 = vmatpush2.msra.mxu0 0.0
    %1814 = vmatprep.subr.mxu0 0.0
    %1815 = vmatpush2.msra.mxu0 0.0
    %1816 = vmatprep.subr.mxu0 0.0
    %1817 = vmatpush2.msra.mxu0 0.0
    %1818 = vmatprep.subr.mxu0 0.0
    %1819 = vmatpush2.msra.mxu0 0.0
    %1820 = vmatprep.subr.mxu0 0.0
    %1821 = vmatpush2.msra.mxu0 0.0
    %1822 = vmatprep.subr.mxu0 0.0
    %1823 = vmatpush2.msra.mxu0 0.0
    %1824 = vmatprep.subr.mxu0 0.0
    %1825 = vmatpush2.msra.mxu0 0.0
    %1826 = vmatprep.subr.mxu0 0.0
    %1827 = vmatpush2.msra.mxu0 0.0
    %1828 = vmatprep.subr.mxu0 0.0
    %1829 = vmatpush2.msra.mxu0 0.0
    %1830 = vmatprep.subr.mxu0 0.0
    %1831 = vmatpush2.msra.mxu0 0.0
    %1832 = vmatprep.subr.mxu0 0.0
    %1833 = vmatpush2.msra.mxu0 0.0
    %1834 = vmatprep.subr.mxu0 0.0
    %1835 = vmatpush2.msra.mxu0 0.0
    %1836 = vmatprep.subr.mxu0 0.0
    %1837 = vmatpush2.msra.mxu0 0.0
    %1838 = vmatprep.mubr.f32.mxu0 0.0
    %1839 = vmatmul.mubr.f32.gmra.mxu0 %v1772
    %v1840 = vpop.f32.mrf.mxu0
    %v1841 = vadd.f32 0.0, %v1840
    %v1842 = vpop.f32.mrf.mxu0
    %1843 = vdwg.mxu0
    %1844 = vrot.lane.b32.xlu0 %v350, 80
    %v1845 = vpop.permute.xlu0 %1844
    %v1848 = vsel %vm514, %v1767, 0
    %1850 = vmatprep.subr.mxu0 0.0
    %1851 = vmatpush1.msra.mxu0 0.0
    %1852 = vmatprep.subr.mxu0 0.0
    %1853 = vmatpush1.msra.mxu0 0.0
    %1854 = vmatprep.subr.mxu0 0.0
    %1855 = vmatpush1.msra.mxu0 0.0
    %1856 = vmatprep.subr.mxu0 0.0
    %1857 = vmatpush1.msra.mxu0 0.0
    %1858 = vmatprep.subr.mxu0 0.0
    %1859 = vmatpush1.msra.mxu0 0.0
    %1860 = vmatprep.subr.mxu0 0.0
    %1861 = vmatpush1.msra.mxu0 0.0
    %1862 = vmatprep.subr.mxu0 0.0
    %1863 = vmatpush1.msra.mxu0 0.0
    %1864 = vmatprep.subr.mxu0 0.0
    %1865 = vmatpush1.msra.mxu0 0.0
    %1866 = vmatprep.subr.mxu0 0.0
    %1867 = vmatpush1.msra.mxu0 0.0
    %1868 = vmatprep.subr.mxu0 0.0
    %1869 = vmatpush1.msra.mxu0 0.0
    %1870 = vmatprep.subr.mxu0 0.0
    %1871 = vmatpush1.msra.mxu0 0.0
    %1872 = vmatprep.subr.mxu0 0.0
    %1873 = vmatpush1.msra.mxu0 0.0
    %1874 = vmatprep.subr.mxu0 0.0
    %1875 = vmatpush1.msra.mxu0 0.0
    %1876 = vmatprep.subr.mxu0 0.0
    %1877 = vmatpush1.msra.mxu0 0.0
    %1878 = vmatprep.subr.mxu0 0.0
    %1879 = vmatpush1.msra.mxu0 0.0
    %1880 = vmatprep.subr.mxu0 0.0
    %1881 = vmatpush1.msra.mxu0 %v1845
    %1882 = vmatprep.subr.mxu0 0.0
    %1883 = vmatpush2.msra.mxu0 0.0
    %1884 = vmatprep.subr.mxu0 0.0
    %1885 = vmatpush2.msra.mxu0 0.0
    %1886 = vmatprep.subr.mxu0 0.0
    %1887 = vmatpush2.msra.mxu0 0.0
    %1888 = vmatprep.subr.mxu0 0.0
    %1889 = vmatpush2.msra.mxu0 0.0
    %1890 = vmatprep.subr.mxu0 0.0
    %1891 = vmatpush2.msra.mxu0 0.0
    %1892 = vmatprep.subr.mxu0 0.0
    %1893 = vmatpush2.msra.mxu0 0.0
    %1894 = vmatprep.subr.mxu0 0.0
    %1895 = vmatpush2.msra.mxu0 0.0
    %1896 = vmatprep.subr.mxu0 0.0
    %1897 = vmatpush2.msra.mxu0 0.0
    %1898 = vmatprep.subr.mxu0 0.0
    %1899 = vmatpush2.msra.mxu0 0.0
    %1900 = vmatprep.subr.mxu0 0.0
    %1901 = vmatpush2.msra.mxu0 0.0
    %1902 = vmatprep.subr.mxu0 0.0
    %1903 = vmatpush2.msra.mxu0 0.0
    %1904 = vmatprep.subr.mxu0 0.0
    %1905 = vmatpush2.msra.mxu0 0.0
    %1906 = vmatprep.subr.mxu0 0.0
    %1907 = vmatpush2.msra.mxu0 0.0
    %1908 = vmatprep.subr.mxu0 0.0
    %1909 = vmatpush2.msra.mxu0 0.0
    %1910 = vmatprep.subr.mxu0 0.0
    %1911 = vmatpush2.msra.mxu0 0.0
    %1912 = vmatprep.subr.mxu0 0.0
    %1913 = vmatpush2.msra.mxu0 0.0
    %1914 = vmatprep.mubr.f32.mxu0 0.0
    %1915 = vmatmul.mubr.f32.gmra.mxu0 %v1848
    %v1916 = vpop.f32.mrf.mxu0
    %v1917 = vadd.f32 0.0, %v1916
    %v1918 = vpop.f32.mrf.mxu0
    %1919 = vdwg.mxu0
    %v1921 = vsel %vm361, %v1841, 0
    %v1924 = vsel %vm361, %v1917, 0
    %1926 = vmatprep.subr.mxu0 0.0
    %1927 = vmatpush1.msra.mxu0 0.0
    %1928 = vmatprep.subr.mxu0 0.0
    %1929 = vmatpush1.msra.mxu0 0.0
    %1930 = vmatprep.subr.mxu0 0.0
    %1931 = vmatpush1.msra.mxu0 0.0
    %1932 = vmatprep.subr.mxu0 0.0
    %1933 = vmatpush1.msra.mxu0 0.0
    %1934 = vmatprep.subr.mxu0 0.0
    %1935 = vmatpush1.msra.mxu0 0.0
    %1936 = vmatprep.subr.mxu0 0.0
    %1937 = vmatpush1.msra.mxu0 0.0
    %1938 = vmatprep.subr.mxu0 0.0
    %1939 = vmatpush1.msra.mxu0 0.0
    %1940 = vmatprep.subr.mxu0 0.0
    %1941 = vmatpush1.msra.mxu0 0.0
    %1942 = vmatprep.subr.mxu0 0.0
    %1943 = vmatpush1.msra.mxu0 0.0
    %1944 = vmatprep.subr.mxu0 0.0
    %1945 = vmatpush1.msra.mxu0 0.0
    %1946 = vmatprep.subr.mxu0 0.0
    %1947 = vmatpush1.msra.mxu0 0.0
    %1948 = vmatprep.subr.mxu0 0.0
    %1949 = vmatpush1.msra.mxu0 0.0
    %1950 = vmatprep.subr.mxu0 0.0
    %1951 = vmatpush1.msra.mxu0 0.0
    %1952 = vmatprep.subr.mxu0 0.0
    %1953 = vmatpush1.msra.mxu0 0.0
    %1954 = vmatprep.subr.mxu0 0.0
    %1955 = vmatpush1.msra.mxu0 %v360
    %1956 = vmatprep.subr.mxu0 0.0
    %1957 = vmatpush1.msra.mxu0 %v359
    %1958 = vmatprep.subr.mxu0 0.0
    %1959 = vmatpush2.msra.mxu0 0.0
    %1960 = vmatprep.subr.mxu0 0.0
    %1961 = vmatpush2.msra.mxu0 0.0
    %1962 = vmatprep.subr.mxu0 0.0
    %1963 = vmatpush2.msra.mxu0 0.0
    %1964 = vmatprep.subr.mxu0 0.0
    %1965 = vmatpush2.msra.mxu0 0.0
    %1966 = vmatprep.subr.mxu0 0.0
    %1967 = vmatpush2.msra.mxu0 0.0
    %1968 = vmatprep.subr.mxu0 0.0
    %1969 = vmatpush2.msra.mxu0 0.0
    %1970 = vmatprep.subr.mxu0 0.0
    %1971 = vmatpush2.msra.mxu0 0.0
    %1972 = vmatprep.subr.mxu0 0.0
    %1973 = vmatpush2.msra.mxu0 0.0
    %1974 = vmatprep.subr.mxu0 0.0
    %1975 = vmatpush2.msra.mxu0 0.0
    %1976 = vmatprep.subr.mxu0 0.0
    %1977 = vmatpush2.msra.mxu0 0.0
    %1978 = vmatprep.subr.mxu0 0.0
    %1979 = vmatpush2.msra.mxu0 0.0
    %1980 = vmatprep.subr.mxu0 0.0
    %1981 = vmatpush2.msra.mxu0 0.0
    %1982 = vmatprep.subr.mxu0 0.0
    %1983 = vmatpush2.msra.mxu0 0.0
    %1984 = vmatprep.subr.mxu0 0.0
    %1985 = vmatpush2.msra.mxu0 0.0
    %1986 = vmatprep.subr.mxu0 0.0
    %1987 = vmatpush2.msra.mxu0 0.0
    %1988 = vmatprep.subr.mxu0 0.0
    %1989 = vmatpush2.msra.mxu0 0.0
    %1990 = vmatprep.mubr.f32.mxu0 0.0
    %1991 = vmatmul.mubr.f32.gmra.mxu0 %v1921
    %v1992 = vpop.f32.mrf.mxu0
    %v1993 = vadd.f32 0.0, %v1992
    %v1994 = vpop.f32.mrf.mxu0
    %1995 = vmatprep.mubr.f32.mxu0 0.0
    %1996 = vmatmul.mubr.f32.gmra.mxu0 %v1924
    %v1997 = vpop.f32.mrf.mxu0
    %v1998 = vadd.f32 0.0, %v1997
    %v1999 = vpop.f32.mrf.mxu0
    %2000 = vdwg.mxu0
    %v2001 = vadd.f32 %v1588, %v1993
    %v2002 = vadd.f32 %v1589, %v1998
    %v2003 = vld [vmem:[%s9] sm:$0x1]
    %v2005 = vlaneseq
    %v2006 = vshrl.u32 %v2005, 7
    %v2007 = vsub.s32 0, %v2006
    %v2008 = vrot.slane %v2003, %v2007
    %v2010 = vadd.f32 %v2001, %v2008
    %v2011 = vadd.f32 %v2002, %v2008
    %2012 = vst.msk [vmem:[#allocation8] sm:$0xff] %vm90, %v2010
    %2013 = vst.msk [vmem:[#allocation8 + $0x8] sm:$0xff] %vm90, %v2011
    // Predicated region
    $region54: #{tpu_custom_call.1} parent=1 // pred_check
      _
    $region55: #{tpu_custom_call.1} parent=1 // pred_check_branch
      %2015 = sbr.rel (0) target = $region57
    $region56: #{tpu_custom_call.1} parent=1 // pred_region
      %s2017 = ssub.s32 256, 256
      %2018 = vsyncadd [#allocation4], %s2017
      %s2019 = sshll.u32 [#allocation8], 4
      %s2020 = int_to_ptr.vmem [resolvable:$true] %s2019
      %2025 = dma.vmem_to_hbm [thread:$0]  %s2020, 256, %s10, [#allocation4], 128, 128, 8
    $region57: #{tpu_custom_call.1} parent=1 // pred_fallthru
      _
    // Predicated region
    $region58: #{tpu_custom_call.1} parent=1 // pred_check
      _
    $region59: #{tpu_custom_call.1} parent=1 // pred_check_branch
      %2027 = sbr.rel (0) target = $region61
    $region60: #{tpu_custom_call.1} parent=1 // pred_region
      %2028 = dma.done [#allocation4], 256
    $region61: #{tpu_custom_call.1} parent=1 // pred_fallthru
      _
    %2029 = vsyncpa [#allocation3], 1
    %2030 = vsyncpa [#allocation6], 1
    %2031 = vsyncpa [#allocation4], 1

</llo_original>
